<compile_context>
chip_gen: v7x
topology: tpu7x:2x2x1
jax: 0.10.0
libtpu: 0.0.40
codegen_flags: <defaults>
</compile_context>

<pallas_src>
import functools

import jax
import jax.numpy as jnp
from jax.experimental import pallas as pl
from jax.experimental.pallas import tpu as pltpu


_LANE = 128   # lane (last-dim) pad target
_SUB = 8      # sublane pad target (graph count)


def _round_up(x, m):
    return (x + m - 1) // m * m


def _pad2(a, rows, cols, dtype):
    a = a.astype(dtype)
    return jnp.pad(a, ((0, rows - a.shape[0]), (0, cols - a.shape[1])))


def _pick_tile(n_pad):
    # Biggest MXU-friendly tile that divides the padded node count
    # (256/512 feed v6e/v7x's 256x256 MXU passes; 128 is fine on v5e).
    for t in (512, 256, 128):
        if n_pad % t == 0:
            return t
    return 128


# -------------------- fused, tiled Pallas kernel (entire forward) --------------------

def _fused_gcn_kernel(num_layers,
                      a_ref, x0_ref, w0_ref, wr_ref, b_ref, p_ref, invc_ref,
                      wlin_ref, blin_ref,
                      o_ref,
                      xact_ref, acc0_ref, acc_ref, pool_ref):
    # a_ref    : (tm, tk)          bf16  streamed tile of A_hat
    # x0_ref   : (tk, Fin_p)       bf16  streamed k-rows of the input features
    # w0_ref   : (Fin_p, H_p)      bf16  layer-0 weight (whole, resident)
    # wr_ref   : (1, H_p, H_p)     bf16  current layer's weight (l >= 1)
    # b_ref    : (1, 1, H_p)       f32   current layer's bias
    # p_ref    : (G_p, tm)         bf16  exact 0/1 one-hot pooling columns for row tile i
    # invc_ref : (G_p, 1)          f32   1/node-count per graph
    # wlin_ref : (H_p, Out_p)      bf16  final linear weight
    # blin_ref : (1, Out_p)        f32   final linear bias
    # o_ref    : (G_p, Out_p)      f32   output (written once, at the last step)
    # xact_ref : (2, N_p, H_p)     bf16  activation ping-pong buffer across layers
    # acc0_ref : (tm, Fin_p)       f32   A@X accumulator, layer 0
    # acc_ref  : (tm, H_p)         f32   A@X accumulator, layers >= 1
    # pool_ref : (G_p, H_p)        f32   pooled-sum accumulator
    l = pl.program_id(0)          # layer            (sequential dependence)
    i = pl.program_id(1)          # A row tile
    k = pl.program_id(2)          # node contraction tile (reduction, innermost)
    n_i = pl.num_programs(1)
    n_k = pl.num_programs(2)
    tm, tk = a_ref.shape

    write_slot = l % 2            # layer l writes slot l%2, layer l+1 reads it
    read_slot = (l + 1) % 2

    @pl.when((l == 0) & (i == 0) & (k == 0))
    def _init_pool():
        pool_ref[...] = jnp.zeros_like(pool_ref)

    # ---------------- (A @ X_prev) accumulation over k ----------------
    @pl.when(l == 0)
    def _acc_layer0():
        @pl.when(k == 0)
        def _():
            acc0_ref[...] = jnp.zeros_like(acc0_ref)
        acc0_ref[...] += jnp.dot(a_ref[...], x0_ref[...],
                                 preferred_element_type=jnp.float32)

    @pl.when(l > 0)
    def _acc_layer():
        @pl.when(k == 0)
        def _():
            acc_ref[...] = jnp.zeros_like(acc_ref)
        row_k = pl.multiple_of(k * tk, tk)
        prev = xact_ref[read_slot, pl.ds(row_k, tk), :]   # previous layer's rows
        acc_ref[...] += jnp.dot(a_ref[...], prev,
                                preferred_element_type=jnp.float32)

    # ---------------- epilogue at the last contraction step ----------------
    @pl.when(k == n_k - 1)
    def _epilogue():
        bias = b_ref[0]                                   # (1, H_p) f32
        row_i = pl.multiple_of(i * tm, tm)

        @pl.when(l == 0)
        def _():
            h = jnp.dot(acc0_ref[...].astype(jnp.bfloat16), w0_ref[...],
                        preferred_element_type=jnp.float32)
            act = jnp.maximum(h + bias, 0.0).astype(jnp.bfloat16)
            xact_ref[write_slot, pl.ds(row_i, tm), :] = act

        @pl.when(l > 0)
        def _():
            h = jnp.dot(acc_ref[...].astype(jnp.bfloat16), wr_ref[0],
                        preferred_element_type=jnp.float32)
            act = jnp.maximum(h + bias, 0.0).astype(jnp.bfloat16)
            xact_ref[write_slot, pl.ds(row_i, tm), :] = act

        # Mean-pool accumulation on the last layer (exact 0/1 one-hot matmul,
        # 1/count scaling applied in f32 at the very end).
        @pl.when(l == num_layers - 1)
        def _pool_acc():
            act = xact_ref[write_slot, pl.ds(row_i, tm), :]
            pool_ref[...] += jnp.dot(p_ref[...], act,
                                     preferred_element_type=jnp.float32)

        @pl.when((l == num_layers - 1) & (i == n_i - 1))
        def _final():
            pooled = pool_ref[...] * invc_ref[...]        # f32 mean
            out = jnp.dot(pooled.astype(jnp.bfloat16), wlin_ref[...],
                          preferred_element_type=jnp.float32)
            o_ref[...] = out + blin_ref[...]


def gcn_forward(params, x, a_hat, pool_onehot, pool_counts):
    """Fused, tiled Pallas forward. Returns (num_graphs, out_channels) float32."""
    n, f_in = x.shape
    g = pool_onehot.shape[0]
    num_layers = len(params["convs"])
    assert num_layers >= 2, "GCN module implies at least 2 conv layers"
    hidden = params["convs"][0][0].shape[1]
    w_lin, b_lin = params["lin"]
    out_c = w_lin.shape[1]

    # Per-dimension padding (no uniform max -> no wasted MXU flops on layer 0 / head).
    f_in_pad = _round_up(f_in, _LANE)
    h_pad = _round_up(hidden, _LANE)
    out_pad = _round_up(out_c, _LANE)
    n_pad = _round_up(n, _LANE)
    g_pad = _round_up(g, _SUB)
    tm = tk = _pick_tile(n_pad)
    n_i = n_pad // tm
    n_k = n_pad // tk

    # bf16 lane-dense matmul operands; f32 biases / scales.
    # (For repeated calls, these padded/cast weights should be cached by the caller.)
    a_p = _pad2(a_hat, n_pad, n_pad, jnp.bfloat16)
    x_p = _pad2(x, n_pad, f_in_pad, jnp.bfloat16)
    w0_p = _pad2(params["convs"][0][0], f_in_pad, h_pad, jnp.bfloat16)
    wr_p = jnp.stack([_pad2(w, h_pad, h_pad, jnp.bfloat16)
                      for (w, _) in params["convs"][1:]])
    b_p = jnp.stack([jnp.pad(b.astype(jnp.float32), (0, h_pad - b.shape[0]))[None, :]
                     for (_, b) in params["convs"]])
    p_p = _pad2(pool_onehot, g_pad, n_pad, jnp.bfloat16)          # exact 0/1 in bf16
    invc_p = jnp.pad(
        jnp.where(pool_counts > 0, 1.0 / pool_counts, 0.0).astype(jnp.float32),
        (0, g_pad - g))[:, None]                                   # (g_pad, 1) f32
    wl_p = _pad2(w_lin, h_pad, out_pad, jnp.bfloat16)
    bl_p = jnp.pad(b_lin.astype(jnp.float32), (0, out_pad - out_c))[None, :]

    grid = (num_layers, n_i, n_k)
    in_specs = [
        # A_hat streamed in (tm, tk) tiles -> DMA pipelines under compute.
        pl.BlockSpec((tm, tk), lambda l, i, k: (i, k)),
        # Input features: only needed on layer 0; freeze the index afterwards.
        pl.BlockSpec((tk, f_in_pad), lambda l, i, k: (jnp.where(l == 0, k, 0), 0)),
        # Layer-0 weight (small, resident).
        pl.BlockSpec((f_in_pad, h_pad), lambda l, i, k: (0, 0)),
        # Per-layer conv weight / bias (double-buffered by the pipeline).
        pl.BlockSpec((1, h_pad, h_pad), lambda l, i, k: (jnp.maximum(l, 1) - 1, 0, 0)),
        pl.BlockSpec((1, 1, h_pad), lambda l, i, k: (l, 0, 0)),
        # Pooling one-hot columns for row tile i (only used on the last layer).
        pl.BlockSpec((g_pad, tm),
                     lambda l, i, k: (0, jnp.where(l == num_layers - 1, i, 0))),
        pl.BlockSpec((g_pad, 1), lambda l, i, k: (0, 0)),
        pl.BlockSpec((h_pad, out_pad), lambda l, i, k: (0, 0)),
        pl.BlockSpec((1, out_pad), lambda l, i, k: (0, 0)),
    ]
    out_spec = pl.BlockSpec((g_pad, out_pad), lambda l, i, k: (0, 0))
    scratch_shapes = [
        pltpu.VMEM((2, n_pad, h_pad), jnp.bfloat16),   # activation ping-pong
        pltpu.VMEM((tm, f_in_pad), jnp.float32),       # A@X accumulator, layer 0
        pltpu.VMEM((tm, h_pad), jnp.float32),          # A@X accumulator, layers >= 1
        pltpu.VMEM((g_pad, h_pad), jnp.float32),       # pooled-sum accumulator
    ]

    # VMEM budget from the actual padded footprint (double-buffered blocks + residents
    # + scratch), 2x headroom for compiler temporaries, clamped to v7x physical.
    bytes_blocked = 2 * (tm * tk * 2 + tk * f_in_pad * 2 + h_pad * h_pad * 2
                         + h_pad * 4 + g_pad * tm * 2)
    bytes_whole = (f_in_pad * h_pad * 2 + g_pad * 4
                   + h_pad * out_pad * 2 + out_pad * 4 + 2 * g_pad * out_pad * 4)
    bytes_scratch = (2 * n_pad * h_pad * 2 + tm * f_in_pad * 4
                     + tm * h_pad * 4 + g_pad * h_pad * 4)
    vmem_limit = int(min(64 * 2**20,
                         max(32 * 2**20,
                             2 * (bytes_blocked + bytes_whole + bytes_scratch))))

    flops = (2 * n_pad * n_pad * f_in_pad + 2 * n_pad * f_in_pad * h_pad
             + (num_layers - 1) * (2 * n_pad * n_pad * h_pad + 2 * n_pad * h_pad * h_pad)
             + 2 * g_pad * n_pad * h_pad + 2 * g_pad * h_pad * out_pad)
    bytes_accessed = (num_layers * n_pad * n_pad * 2 + n_pad * f_in_pad * 2
                      + f_in_pad * h_pad * 2 + (num_layers - 1) * h_pad * h_pad * 2
                      + g_pad * n_pad * 2 + h_pad * out_pad * 2 + g_pad * out_pad * 4)

    out = pl.pallas_call(
        functools.partial(_fused_gcn_kernel, num_layers),
        out_shape=jax.ShapeDtypeStruct((g_pad, out_pad), jnp.float32),
        grid_spec=pltpu.PrefetchScalarGridSpec(
            num_scalar_prefetch=0,
            grid=grid,
            in_specs=in_specs,
            out_specs=out_spec,
            scratch_shapes=scratch_shapes),
        compiler_params=pltpu.CompilerParams(
            # TODO(synk): the row-tile axis cannot be "parallel" while all layers
            # share one call (the activation scratch is per-TensorCore); to use
            # v7x's second TC, split into one pallas_call per layer with the row
            # axis marked "parallel".
            dimension_semantics=("arbitrary", "arbitrary", "arbitrary"),
            vmem_limit_bytes=vmem_limit),
        cost_estimate=pl.CostEstimate(flops=flops, transcendentals=0,
                                      bytes_accessed=bytes_accessed),
    )(a_p, x_p, w0_p, wr_p, b_p, p_p, invc_p, wl_p, bl_p)
    return out[:g, :out_c]


# -------------------- glue: graph preprocessing & params --------------------

def build_normalized_adjacency(edge_index, num_nodes):
    """A_hat = D^-1/2 (A + I) D^-1/2, dense (N, N).

    Duplicate edges accumulate (PyG scatter-add semantics). Assumes edge_index
    carries no explicit self-loops (true for the test graph).
    """
    src, dst = edge_index[0], edge_index[1]
    a = jnp.zeros((num_nodes, num_nodes), jnp.float32)
    a = a.at[dst, src].add(1.0)                          # message flows src -> dst
    a = a + jnp.eye(num_nodes, dtype=jnp.float32)        # self loops
    deg = jnp.sum(a, axis=1)
    dinv = jnp.where(deg > 0, 1.0 / jnp.sqrt(deg), 0.0)
    return dinv[:, None] * a * dinv[None, :]


def build_mean_pool_onehot(batch, num_graphs, num_nodes):
    """Exact 0/1 graph-membership matrix (G, N) and per-graph node counts (G,)."""
    onehot = (batch[None, :] == jnp.arange(num_graphs)[:, None]).astype(jnp.float32)
    counts = jnp.sum(onehot, axis=1)
    return onehot, counts


def init_gcn_params(key, in_channels, hidden_channels, out_channels, num_layers):
    dims = [in_channels] + [hidden_channels] * num_layers   # all convs output hidden
    params = {"convs": [], "lin": None}
    for i in range(num_layers):
        key, kw = jax.random.split(key)
        fan_in, fan_out = dims[i], dims[i + 1]
        scale = jnp.sqrt(6.0 / (fan_in + fan_out))           # glorot
        w = jax.random.uniform(kw, (fan_in, fan_out), jnp.float32, -scale, scale)
        b = jnp.zeros((fan_out,), jnp.float32)
        params["convs"].append((w, b))
    key, kw, kb = jax.random.split(key, 3)
    bound = 1.0 / jnp.sqrt(hidden_channels)
    w_lin = jax.random.uniform(kw, (hidden_channels, out_channels),
                               jnp.float32, -bound, bound)
    b_lin = jax.random.uniform(kb, (out_channels,), jnp.float32, -bound, bound)
    params["lin"] = (w_lin, b_lin)
    return params


# -------------------- references (plain JAX) for sanity --------------------

def gcn_forward_ref_f32(params, x, a_hat, onehot, counts):
    for (w, b) in params["convs"]:
        x = jnp.maximum(a_hat @ (x @ w) + b[None, :], 0.0)
    pooled = (onehot @ x) / jnp.maximum(counts, 1.0)[:, None]
    w_lin, b_lin = params["lin"]
    return pooled @ w_lin + b_lin[None, :]


def gcn_forward_ref_bf16(params, x, a_hat, onehot, counts):
    """Mirrors the kernel's precision recipe: bf16 operands, f32 accumulation,
    (A @ X) @ W ordering, exact one-hot pooling with f32 1/count scaling."""
    a = a_hat.astype(jnp.bfloat16)
    x = x.astype(jnp.bfloat16)
    for (w, b) in params["convs"]:
        ax = jnp.dot(a, x, preferred_element_type=jnp.float32)
        h = jnp.dot(ax.astype(jnp.bfloat16), w.astype(jnp.bfloat16),
                    preferred_element_type=jnp.float32)
        x = jnp.maximum(h + b[None, :], 0.0).astype(jnp.bfloat16)
    psum = jnp.dot(onehot.astype(jnp.bfloat16), x, preferred_element_type=jnp.float32)
    pooled = psum * jnp.where(counts > 0, 1.0 / counts, 0.0)[:, None]
    w_lin, b_lin = params["lin"]
    return jnp.dot(pooled.astype(jnp.bfloat16), w_lin.astype(jnp.bfloat16),
                   preferred_element_type=jnp.float32) + b_lin[None, :]


# -------------------- main --------------------

if __name__ == "__main__":
    key = jax.random.PRNGKey(0)

    num_nodes = 16
    in_channels = 8
    hidden_channels = 32
    out_channels = 4
    num_layers = 3
    num_graphs = 2

    key, kx = jax.random.split(key)
    x = jax.random.normal(kx, (num_nodes, in_channels), jnp.float32)

    # Deterministic edges: a ring within each graph of 8 nodes, both directions.
    edges = []
    nodes_per_graph = num_nodes // num_graphs
    for gi in range(num_graphs):
        base = gi * nodes_per_graph
        for ii in range(nodes_per_graph):
            u, v = base + ii, base + (ii + 1) % nodes_per_graph
            edges.append((u, v))
            edges.append((v, u))
    edge_index = jnp.array(edges, dtype=jnp.int32).T  # (2, E)

    # Nodes 0..7 -> graph 0, nodes 8..15 -> graph 1.
    batch = jnp.repeat(jnp.arange(num_graphs, dtype=jnp.int32), nodes_per_graph)

    # Built once per graph (cache these across forward calls in real use).
    a_hat = build_normalized_adjacency(edge_index, num_nodes)
    onehot, counts = build_mean_pool_onehot(batch, num_graphs, num_nodes)
    params = init_gcn_params(key, in_channels, hidden_channels,
                             out_channels, num_layers)

    fwd = jax.jit(gcn_forward)
    out = jax.block_until_ready(fwd(params, x, a_hat, onehot, counts))
    assert out.shape == (num_graphs, out_channels)

    # Kernel-correctness check: same bf16/f32 precision recipe in plain JAX.
    ref_bf16 = gcn_forward_ref_bf16(params, x, a_hat, onehot, counts)
    assert jnp.allclose(out, ref_bf16, atol=2e-3, rtol=2e-2), (out, ref_bf16)

    # Semantic check vs. pure-f32 reference (tolerance sized for bf16 operands).
    ref_f32 = gcn_forward_ref_f32(params, x, a_hat, onehot, counts)
    assert jnp.allclose(out, ref_f32, atol=5e-2, rtol=5e-2), (out, ref_f32)

    print("KERNEL_OK")
</pallas_src>

<mosaic_0001>
module attributes {stable_mosaic.version = 11 : i64} {
  func.func @_fused_gcn_kernel(%arg0: i32, %arg1: i32, %arg2: i32, %arg3: memref<128x128xbf16, #tpu.memory_space<vmem>>, %arg4: memref<128x128xbf16, #tpu.memory_space<vmem>>, %arg5: memref<128x128xbf16, #tpu.memory_space<vmem>>, %arg6: memref<1x128x128xbf16, #tpu.memory_space<vmem>>, %arg7: memref<1x1x128xf32, #tpu.memory_space<vmem>>, %arg8: memref<8x128xbf16, #tpu.memory_space<vmem>>, %arg9: memref<8x1xf32, #tpu.memory_space<vmem>>, %arg10: memref<128x128xbf16, #tpu.memory_space<vmem>>, %arg11: memref<1x128xf32, #tpu.memory_space<vmem>>, %arg12: memref<8x128xf32, #tpu.memory_space<vmem>>, %arg13: memref<2x128x128xbf16, #tpu.memory_space<vmem>>, %arg14: memref<128x128xf32, #tpu.memory_space<vmem>>, %arg15: memref<128x128xf32, #tpu.memory_space<vmem>>, %arg16: memref<8x128xf32, #tpu.memory_space<vmem>>) attributes {dimension_semantics = [#tpu.dimension_semantics<arbitrary>, #tpu.dimension_semantics<arbitrary>, #tpu.dimension_semantics<arbitrary>], iteration_bounds = array<i64: 3, 1, 1>, scalar_prefetch = 0 : i64, scratch_operands = 4 : i64, tpu.core_type = #tpu.core_type<tc>, window_params = [{transform_indices = @transform_0, window_bounds = array<i64: 128, 128>}, {transform_indices = @transform_1, window_bounds = array<i64: 128, 128>}, {pipeline_mode = #tpu.pipeline_mode<synchronous>, transform_indices = @transform_2, window_bounds = array<i64: 128, 128>}, {transform_indices = @transform_3, window_bounds = array<i64: 1, 128, 128>}, {transform_indices = @transform_4, window_bounds = array<i64: 1, 1, 128>}, {transform_indices = @transform_5, window_bounds = array<i64: 8, 128>}, {pipeline_mode = #tpu.pipeline_mode<synchronous>, transform_indices = @transform_6, window_bounds = array<i64: 8, 1>}, {pipeline_mode = #tpu.pipeline_mode<synchronous>, transform_indices = @transform_7, window_bounds = array<i64: 128, 128>}, {pipeline_mode = #tpu.pipeline_mode<synchronous>, transform_indices = @transform_8, window_bounds = array<i64: 1, 128>}, {pipeline_mode = #tpu.pipeline_mode<synchronous>, transform_indices = @transform_9, window_bounds = array<i64: 8, 128>}]} {
    %c2_i32 = arith.constant 2 : i32
    %c0_i32 = arith.constant 0 : i32
    %0 = arith.cmpi eq, %c2_i32, %c0_i32 : i32
    %c1_i32 = arith.constant 1 : i32
    %1 = arith.select %0, %c1_i32, %c2_i32 : i32
    %2 = arith.remsi %arg0, %1 : i32
    %c0_i32_0 = arith.constant 0 : i32
    %3 = arith.cmpi ne, %2, %c0_i32_0 : i32
    %c0_i32_1 = arith.constant 0 : i32
    %4 = arith.cmpi slt, %2, %c0_i32_1 : i32
    %c0_i32_2 = arith.constant 0 : i32
    %5 = arith.cmpi slt, %1, %c0_i32_2 : i32
    %6 = arith.xori %4, %5 : i1
    %7 = arith.andi %6, %3 : i1
    %8 = arith.addi %2, %1 : i32
    %9 = arith.select %7, %8, %2 : i32
    %c1_i32_3 = arith.constant 1 : i32
    %10 = arith.addi %arg0, %c1_i32_3 : i32
    %c2_i32_4 = arith.constant 2 : i32
    %c0_i32_5 = arith.constant 0 : i32
    %11 = arith.cmpi eq, %c2_i32_4, %c0_i32_5 : i32
    %c1_i32_6 = arith.constant 1 : i32
    %12 = arith.select %11, %c1_i32_6, %c2_i32_4 : i32
    %13 = arith.remsi %10, %12 : i32
    %c0_i32_7 = arith.constant 0 : i32
    %14 = arith.cmpi ne, %13, %c0_i32_7 : i32
    %c0_i32_8 = arith.constant 0 : i32
    %15 = arith.cmpi slt, %13, %c0_i32_8 : i32
    %c0_i32_9 = arith.constant 0 : i32
    %16 = arith.cmpi slt, %12, %c0_i32_9 : i32
    %17 = arith.xori %15, %16 : i1
    %18 = arith.andi %17, %14 : i1
    %19 = arith.addi %13, %12 : i32
    %20 = arith.select %18, %19, %13 : i32
    %c0_i32_10 = arith.constant 0 : i32
    %21 = arith.cmpi eq, %arg0, %c0_i32_10 : i32
    %c0_i32_11 = arith.constant 0 : i32
    %22 = arith.cmpi eq, %arg1, %c0_i32_11 : i32
    %23 = arith.andi %21, %22 : i1
    %c0_i32_12 = arith.constant 0 : i32
    %24 = arith.cmpi eq, %arg2, %c0_i32_12 : i32
    %25 = arith.andi %23, %24 : i1
    %26 = arith.extui %25 : i1 to i32
    %c0_i32_13 = arith.constant 0 : i32
    %27 = arith.cmpi ne, %26, %c0_i32_13 : i32
    scf.if %27 {
      %cst = arith.constant 0.000000e+00 : f32
      %37 = vector.broadcast %cst : f32 to vector<8x128xf32>
      %c0 = arith.constant 0 : index
      %c0_20 = arith.constant 0 : index
      %38 = vector.load %arg16[%c0, %c0_20] : memref<8x128xf32, #tpu.memory_space<vmem>>, vector<8x128xf32>
      tpu.vector_store %arg16[%c0, %c0_20], %37 {strides = array<i32>} : memref<8x128xf32, #tpu.memory_space<vmem>>, vector<8x128xf32>,
    } else {
    }
    %c0_i32_14 = arith.constant 0 : i32
    %28 = arith.cmpi eq, %arg0, %c0_i32_14 : i32
    %29 = arith.extui %28 : i1 to i32
    %c0_i32_15 = arith.constant 0 : i32
    %30 = arith.cmpi ne, %29, %c0_i32_15 : i32
    scf.if %30 {
      %c0_i32_20 = arith.constant 0 : i32
      %37 = arith.cmpi eq, %arg2, %c0_i32_20 : i32
      %38 = arith.extui %37 : i1 to i32
      %c0_i32_21 = arith.constant 0 : i32
      %39 = arith.cmpi ne, %38, %c0_i32_21 : i32
      scf.if %39 {
        %cst_29 = arith.constant 0.000000e+00 : f32
        %46 = vector.broadcast %cst_29 : f32 to vector<128x128xf32>
        %c0_30 = arith.constant 0 : index
        %c0_31 = arith.constant 0 : index
        %47 = vector.load %arg14[%c0_30, %c0_31] : memref<128x128xf32, #tpu.memory_space<vmem>>, vector<128x128xf32>
        tpu.vector_store %arg14[%c0_30, %c0_31], %46 {strides = array<i32>} : memref<128x128xf32, #tpu.memory_space<vmem>>, vector<128x128xf32>,
      } else {
      }
      %c0 = arith.constant 0 : index
      %c0_22 = arith.constant 0 : index
      %40 = vector.load %arg14[%c0, %c0_22] : memref<128x128xf32, #tpu.memory_space<vmem>>, vector<128x128xf32>
      %c0_23 = arith.constant 0 : index
      %c0_24 = arith.constant 0 : index
      %41 = vector.load %arg3[%c0_23, %c0_24] : memref<128x128xbf16, #tpu.memory_space<vmem>>, vector<128x128xbf16>
      %c0_25 = arith.constant 0 : index
      %c0_26 = arith.constant 0 : index
      %42 = vector.load %arg4[%c0_25, %c0_26] : memref<128x128xbf16, #tpu.memory_space<vmem>>, vector<128x128xbf16>
      %cst = arith.constant dense<0.000000e+00> : vector<128x128xf32>
      %43 = tpu.matmul %41, %42, %cst {dimension_numbers = #tpu.dot_dimension_numbers<[1], [0], [0], [1], [0, 0, 1, 1], [], []>} : vector<128x128xbf16>, vector<128x128xbf16>, vector<128x128xf32> -> vector<128x128xf32>
      %44 = arith.addf %40, %43 : vector<128x128xf32>
      %c0_27 = arith.constant 0 : index
      %c0_28 = arith.constant 0 : index
      %45 = vector.load %arg14[%c0_27, %c0_28] : memref<128x128xf32, #tpu.memory_space<vmem>>, vector<128x128xf32>
      tpu.vector_store %arg14[%c0_27, %c0_28], %44 {strides = array<i32>} : memref<128x128xf32, #tpu.memory_space<vmem>>, vector<128x128xf32>,
    } else {
    }
    %c0_i32_16 = arith.constant 0 : i32
    %31 = arith.cmpi sgt, %arg0, %c0_i32_16 : i32
    %32 = arith.extui %31 : i1 to i32
    %c0_i32_17 = arith.constant 0 : i32
    %33 = arith.cmpi ne, %32, %c0_i32_17 : i32
    scf.if %33 {
      %c0_i32_20 = arith.constant 0 : i32
      %37 = arith.cmpi eq, %arg2, %c0_i32_20 : i32
      %38 = arith.extui %37 : i1 to i32
      %c0_i32_21 = arith.constant 0 : i32
      %39 = arith.cmpi ne, %38, %c0_i32_21 : i32
      scf.if %39 {
        %cst_28 = arith.constant 0.000000e+00 : f32
        %51 = vector.broadcast %cst_28 : f32 to vector<128x128xf32>
        %c0_29 = arith.constant 0 : index
        %c0_30 = arith.constant 0 : index
        %52 = vector.load %arg15[%c0_29, %c0_30] : memref<128x128xf32, #tpu.memory_space<vmem>>, vector<128x128xf32>
        tpu.vector_store %arg15[%c0_29, %c0_30], %51 {strides = array<i32>} : memref<128x128xf32, #tpu.memory_space<vmem>>, vector<128x128xf32>,
      } else {
      }
      %c128_i32 = arith.constant 128 : i32
      %40 = arith.muli %arg2, %c128_i32 : i32
      %41 = tpu.assume_multiple %40, 128 : i32
      %42 = arith.index_cast %20 : i32 to index
      %43 = arith.index_cast %41 : i32 to index
      %c0 = arith.constant 0 : index
      %44 = vector.load %arg13[%42, %43, %c0] : memref<2x128x128xbf16, #tpu.memory_space<vmem>>, vector<1x128x128xbf16>
      %45 = vector.shape_cast %44 : vector<1x128x128xbf16> to vector<128x128xbf16>
      %c0_22 = arith.constant 0 : index
      %c0_23 = arith.constant 0 : index
      %46 = vector.load %arg15[%c0_22, %c0_23] : memref<128x128xf32, #tpu.memory_space<vmem>>, vector<128x128xf32>
      %c0_24 = arith.constant 0 : index
      %c0_25 = arith.constant 0 : index
      %47 = vector.load %arg3[%c0_24, %c0_25] : memref<128x128xbf16, #tpu.memory_space<vmem>>, vector<128x128xbf16>
      %cst = arith.constant dense<0.000000e+00> : vector<128x128xf32>
      %48 = tpu.matmul %47, %45, %cst {dimension_numbers = #tpu.dot_dimension_numbers<[1], [0], [0], [1], [0, 0, 1, 1], [], []>} : vector<128x128xbf16>, vector<128x128xbf16>, vector<128x128xf32> -> vector<128x128xf32>
      %49 = arith.addf %46, %48 : vector<128x128xf32>
      %c0_26 = arith.constant 0 : index
      %c0_27 = arith.constant 0 : index
      %50 = vector.load %arg15[%c0_26, %c0_27] : memref<128x128xf32, #tpu.memory_space<vmem>>, vector<128x128xf32>
      tpu.vector_store %arg15[%c0_26, %c0_27], %49 {strides = array<i32>} : memref<128x128xf32, #tpu.memory_space<vmem>>, vector<128x128xf32>,
    } else {
    }
    %c0_i32_18 = arith.constant 0 : i32
    %34 = arith.cmpi eq, %arg2, %c0_i32_18 : i32
    %35 = arith.extui %34 : i1 to i32
    %c0_i32_19 = arith.constant 0 : i32
    %36 = arith.cmpi ne, %35, %c0_i32_19 : i32
    scf.if %36 {
      %c0 = arith.constant 0 : index
      %c0_20 = arith.constant 0 : index
      %c0_21 = arith.constant 0 : index
      %37 = vector.load %arg7[%c0, %c0_20, %c0_21] : memref<1x1x128xf32, #tpu.memory_space<vmem>>, vector<1x1x128xf32>
      %38 = vector.shape_cast %37 : vector<1x1x128xf32> to vector<1x128xf32>
      %c128_i32 = arith.constant 128 : i32
      %39 = arith.muli %arg1, %c128_i32 : i32
      %40 = tpu.assume_multiple %39, 128 : i32
      %c0_i32_22 = arith.constant 0 : i32
      %41 = arith.cmpi eq, %arg0, %c0_i32_22 : i32
      %42 = arith.extui %41 : i1 to i32
      %c0_i32_23 = arith.constant 0 : i32
      %43 = arith.cmpi ne, %42, %c0_i32_23 : i32
      scf.if %43 {
        %c0_31 = arith.constant 0 : index
        %c0_32 = arith.constant 0 : index
        %55 = vector.load %arg14[%c0_31, %c0_32] : memref<128x128xf32, #tpu.memory_space<vmem>>, vector<128x128xf32>
        %56 = arith.truncf %55 : vector<128x128xf32> to vector<128x128xbf16>
        %c0_33 = arith.constant 0 : index
        %c0_34 = arith.constant 0 : index
        %57 = vector.load %arg5[%c0_33, %c0_34] : memref<128x128xbf16, #tpu.memory_space<vmem>>, vector<128x128xbf16>
        %cst = arith.constant dense<0.000000e+00> : vector<128x128xf32>
        %58 = tpu.matmul %56, %57, %cst {dimension_numbers = #tpu.dot_dimension_numbers<[1], [0], [0], [1], [0, 0, 1, 1], [], []>} : vector<128x128xbf16>, vector<128x128xbf16>, vector<128x128xf32> -> vector<128x128xf32>
        %59 = vector.broadcast %38 : vector<1x128xf32> to vector<128x128xf32>
        %60 = arith.addf %58, %59 : vector<128x128xf32>
        %cst_35 = arith.constant 0.000000e+00 : f32
        %61 = vector.broadcast %cst_35 : f32 to vector<128x128xf32>
        %62 = arith.maximumf %60, %61 : vector<128x128xf32>
        %63 = arith.truncf %62 : vector<128x128xf32> to vector<128x128xbf16>
        %64 = arith.index_cast %9 : i32 to index
        %65 = arith.index_cast %40 : i32 to index
        %c0_36 = arith.constant 0 : index
        %66 = vector.load %arg13[%64, %65, %c0_36] : memref<2x128x128xbf16, #tpu.memory_space<vmem>>, vector<1x128x128xbf16>
        %67 = vector.shape_cast %66 : vector<1x128x128xbf16> to vector<128x128xbf16>
        %68 = vector.shape_cast %63 : vector<128x128xbf16> to vector<1x128x128xbf16>
        tpu.vector_store %arg13[%64, %65, %c0_36], %68 {strides = array<i32>} : memref<2x128x128xbf16, #tpu.memory_space<vmem>>, vector<1x128x128xbf16>,
      } else {
      }
      %c0_i32_24 = arith.constant 0 : i32
      %44 = arith.cmpi sgt, %arg0, %c0_i32_24 : i32
      %45 = arith.extui %44 : i1 to i32
      %c0_i32_25 = arith.constant 0 : i32
      %46 = arith.cmpi ne, %45, %c0_i32_25 : i32
      scf.if %46 {
        %c0_31 = arith.constant 0 : index
        %c0_32 = arith.constant 0 : index
        %55 = vector.load %arg15[%c0_31, %c0_32] : memref<128x128xf32, #tpu.memory_space<vmem>>, vector<128x128xf32>
        %56 = arith.truncf %55 : vector<128x128xf32> to vector<128x128xbf16>
        %c0_33 = arith.constant 0 : index
        %c0_34 = arith.constant 0 : index
        %c0_35 = arith.constant 0 : index
        %57 = vector.load %arg6[%c0_33, %c0_34, %c0_35] : memref<1x128x128xbf16, #tpu.memory_space<vmem>>, vector<1x128x128xbf16>
        %58 = vector.shape_cast %57 : vector<1x128x128xbf16> to vector<128x128xbf16>
        %cst = arith.constant dense<0.000000e+00> : vector<128x128xf32>
        %59 = tpu.matmul %56, %58, %cst {dimension_numbers = #tpu.dot_dimension_numbers<[1], [0], [0], [1], [0, 0, 1, 1], [], []>} : vector<128x128xbf16>, vector<128x128xbf16>, vector<128x128xf32> -> vector<128x128xf32>
        %60 = vector.broadcast %38 : vector<1x128xf32> to vector<128x128xf32>
        %61 = arith.addf %59, %60 : vector<128x128xf32>
        %cst_36 = arith.constant 0.000000e+00 : f32
        %62 = vector.broadcast %cst_36 : f32 to vector<128x128xf32>
        %63 = arith.maximumf %61, %62 : vector<128x128xf32>
        %64 = arith.truncf %63 : vector<128x128xf32> to vector<128x128xbf16>
        %65 = arith.index_cast %9 : i32 to index
        %66 = arith.index_cast %40 : i32 to index
        %c0_37 = arith.constant 0 : index
        %67 = vector.load %arg13[%65, %66, %c0_37] : memref<2x128x128xbf16, #tpu.memory_space<vmem>>, vector<1x128x128xbf16>
        %68 = vector.shape_cast %67 : vector<1x128x128xbf16> to vector<128x128xbf16>
        %69 = vector.shape_cast %64 : vector<128x128xbf16> to vector<1x128x128xbf16>
        tpu.vector_store %arg13[%65, %66, %c0_37], %69 {strides = array<i32>} : memref<2x128x128xbf16, #tpu.memory_space<vmem>>, vector<1x128x128xbf16>,
      } else {
      }
      %c2_i32_26 = arith.constant 2 : i32
      %47 = arith.cmpi eq, %arg0, %c2_i32_26 : i32
      %48 = arith.extui %47 : i1 to i32
      %c0_i32_27 = arith.constant 0 : i32
      %49 = arith.cmpi ne, %48, %c0_i32_27 : i32
      scf.if %49 {
        %55 = arith.index_cast %9 : i32 to index
        %56 = arith.index_cast %40 : i32 to index
        %c0_31 = arith.constant 0 : index
        %57 = vector.load %arg13[%55, %56, %c0_31] : memref<2x128x128xbf16, #tpu.memory_space<vmem>>, vector<1x128x128xbf16>
        %58 = vector.shape_cast %57 : vector<1x128x128xbf16> to vector<128x128xbf16>
        %c0_32 = arith.constant 0 : index
        %c0_33 = arith.constant 0 : index
        %59 = vector.load %arg16[%c0_32, %c0_33] : memref<8x128xf32, #tpu.memory_space<vmem>>, vector<8x128xf32>
        %c0_34 = arith.constant 0 : index
        %c0_35 = arith.constant 0 : index
        %60 = vector.load %arg8[%c0_34, %c0_35] : memref<8x128xbf16, #tpu.memory_space<vmem>>, vector<8x128xbf16>
        %cst = arith.constant dense<0.000000e+00> : vector<8x128xf32>
        %61 = tpu.matmul %60, %58, %cst {dimension_numbers = #tpu.dot_dimension_numbers<[1], [0], [0], [1], [0, 0, 1, 1], [], []>} : vector<8x128xbf16>, vector<128x128xbf16>, vector<8x128xf32> -> vector<8x128xf32>
        %62 = arith.addf %59, %61 : vector<8x128xf32>
        %c0_36 = arith.constant 0 : index
        %c0_37 = arith.constant 0 : index
        %63 = vector.load %arg16[%c0_36, %c0_37] : memref<8x128xf32, #tpu.memory_space<vmem>>, vector<8x128xf32>
        tpu.vector_store %arg16[%c0_36, %c0_37], %62 {strides = array<i32>} : memref<8x128xf32, #tpu.memory_space<vmem>>, vector<8x128xf32>,
      } else {
      }
      %c2_i32_28 = arith.constant 2 : i32
      %50 = arith.cmpi eq, %arg0, %c2_i32_28 : i32
      %c0_i32_29 = arith.constant 0 : i32
      %51 = arith.cmpi eq, %arg1, %c0_i32_29 : i32
      %52 = arith.andi %50, %51 : i1
      %53 = arith.extui %52 : i1 to i32
      %c0_i32_30 = arith.constant 0 : i32
      %54 = arith.cmpi ne, %53, %c0_i32_30 : i32
      scf.if %54 {
        %c0_31 = arith.constant 0 : index
        %c0_32 = arith.constant 0 : index
        %55 = vector.load %arg16[%c0_31, %c0_32] : memref<8x128xf32, #tpu.memory_space<vmem>>, vector<8x128xf32>
        %c0_33 = arith.constant 0 : index
        %c0_34 = arith.constant 0 : index
        %56 = vector.load %arg9[%c0_33, %c0_34] : memref<8x1xf32, #tpu.memory_space<vmem>>, vector<8x1xf32>
        %57 = vector.broadcast %56 : vector<8x1xf32> to vector<8x128xf32>
        %58 = arith.mulf %55, %57 : vector<8x128xf32>
        %59 = arith.truncf %58 : vector<8x128xf32> to vector<8x128xbf16>
        %c0_35 = arith.constant 0 : index
        %c0_36 = arith.constant 0 : index
        %60 = vector.load %arg10[%c0_35, %c0_36] : memref<128x128xbf16, #tpu.memory_space<vmem>>, vector<128x128xbf16>
        %cst = arith.constant dense<0.000000e+00> : vector<8x128xf32>
        %61 = tpu.matmul %59, %60, %cst {dimension_numbers = #tpu.dot_dimension_numbers<[1], [0], [0], [1], [0, 0, 1, 1], [], []>} : vector<8x128xbf16>, vector<128x128xbf16>, vector<8x128xf32> -> vector<8x128xf32>
        %c0_37 = arith.constant 0 : index
        %c0_38 = arith.constant 0 : index
        %62 = vector.load %arg11[%c0_37, %c0_38] : memref<1x128xf32, #tpu.memory_space<vmem>>, vector<1x128xf32>
        %63 = vector.broadcast %62 : vector<1x128xf32> to vector<8x128xf32>
        %64 = arith.addf %61, %63 : vector<8x128xf32>
        %c0_39 = arith.constant 0 : index
        %c0_40 = arith.constant 0 : index
        %65 = vector.load %arg12[%c0_39, %c0_40] : memref<8x128xf32, #tpu.memory_space<vmem>>, vector<8x128xf32>
        tpu.vector_store %arg12[%c0_39, %c0_40], %64 {strides = array<i32>} : memref<8x128xf32, #tpu.memory_space<vmem>>, vector<8x128xf32>,
      } else {
      }
    } else {
    }
    return
  }
  func.func @transform_0(%arg0: i32, %arg1: i32, %arg2: i32) -> (i32, i32) {
    %c0_i32 = arith.constant 0 : i32
    return %arg1, %arg2 : i32, i32
  }
  func.func @transform_1(%arg0: i32, %arg1: i32, %arg2: i32) -> (i32, i32) {
    %c0_i32 = arith.constant 0 : i32
    %0 = arith.cmpi eq, %arg0, %c0_i32 : i32
    %c0_i32_0 = arith.constant 0 : i32
    %1 = arith.select %0, %arg2, %c0_i32_0 : i32
    %c0_i32_1 = arith.constant 0 : i32
    %c0_i32_2 = arith.constant 0 : i32
    return %1, %c0_i32_1 : i32, i32
  }
  func.func @transform_2(%arg0: i32, %arg1: i32, %arg2: i32) -> (i32, i32) {
    %c0_i32 = arith.constant 0 : i32
    %c0_i32_0 = arith.constant 0 : i32
    %c0_i32_1 = arith.constant 0 : i32
    return %c0_i32, %c0_i32_0 : i32, i32
  }
  func.func @transform_3(%arg0: i32, %arg1: i32, %arg2: i32) -> (i32, i32, i32) {
    %c1_i32 = arith.constant 1 : i32
    %0 = arith.maxsi %arg0, %c1_i32 : i32
    %c1_i32_0 = arith.constant 1 : i32
    %1 = arith.subi %0, %c1_i32_0 : i32
    %c0_i32 = arith.constant 0 : i32
    %c0_i32_1 = arith.constant 0 : i32
    %c0_i32_2 = arith.constant 0 : i32
    return %1, %c0_i32, %c0_i32_1 : i32, i32, i32
  }
  func.func @transform_4(%arg0: i32, %arg1: i32, %arg2: i32) -> (i32, i32, i32) {
    %c0_i32 = arith.constant 0 : i32
    %c0_i32_0 = arith.constant 0 : i32
    %c0_i32_1 = arith.constant 0 : i32
    return %arg0, %c0_i32, %c0_i32_0 : i32, i32, i32
  }
  func.func @transform_5(%arg0: i32, %arg1: i32, %arg2: i32) -> (i32, i32) {
    %c2_i32 = arith.constant 2 : i32
    %0 = arith.cmpi eq, %arg0, %c2_i32 : i32
    %c0_i32 = arith.constant 0 : i32
    %1 = arith.select %0, %arg1, %c0_i32 : i32
    %c0_i32_0 = arith.constant 0 : i32
    %c0_i32_1 = arith.constant 0 : i32
    return %c0_i32_0, %1 : i32, i32
  }
  func.func @transform_6(%arg0: i32, %arg1: i32, %arg2: i32) -> (i32, i32) {
    %c0_i32 = arith.constant 0 : i32
    %c0_i32_0 = arith.constant 0 : i32
    %c0_i32_1 = arith.constant 0 : i32
    return %c0_i32, %c0_i32_0 : i32, i32
  }
  func.func @transform_7(%arg0: i32, %arg1: i32, %arg2: i32) -> (i32, i32) {
    %c0_i32 = arith.constant 0 : i32
    %c0_i32_0 = arith.constant 0 : i32
    %c0_i32_1 = arith.constant 0 : i32
    return %c0_i32, %c0_i32_0 : i32, i32
  }
  func.func @transform_8(%arg0: i32, %arg1: i32, %arg2: i32) -> (i32, i32) {
    %c0_i32 = arith.constant 0 : i32
    %c0_i32_0 = arith.constant 0 : i32
    %c0_i32_1 = arith.constant 0 : i32
    return %c0_i32, %c0_i32_0 : i32, i32
  }
  func.func @transform_9(%arg0: i32, %arg1: i32, %arg2: i32) -> (i32, i32) {
    %c0_i32 = arith.constant 0 : i32
    %c0_i32_0 = arith.constant 0 : i32
    %c0_i32_1 = arith.constant 0 : i32
    return %c0_i32, %c0_i32_0 : i32, i32
  }
}

</mosaic_0001>

<llo_original>
// kernel: gcn_forward.1
$region0: #{gcn_forward.1}
  #allocation0 [shape = 'u32[]', space=smem, size = 0x4, offset = 0x4, fixed_abs, tag = 'smem constant byte address 0x4 - core index']
  #allocation1 [shape = 'u32[144,128]{1,0:T(1,128)}', space=vmem, size = 0x12000, scoped, tag = 'internal scratch']
  #allocation2 [shape = 'bf16[2,128,128]{2,1,0:T(16,128)(2,1)}', space=vmem, size = 0x10000, scoped, tag = 'scratch operand']
  #allocation3 [shape = 'f32[128,128]{1,0:T(8,128)}', space=vmem, size = 0x10000, scoped, tag = 'scratch operand']
  #allocation4 [shape = 'f32[128,128]{1,0:T(8,128)}', space=vmem, size = 0x10000, scoped, tag = 'scratch operand']
  #allocation5 [shape = 'f32[8,128]{1,0:T(8,128)}', space=vmem, size = 0x1000, scoped, tag = 'scratch operand']
  %s0 = inlined_call_operand.vmem [shape: bf16[128,128], index: 0, kind: input, shape index: {}]
  %s1 = inlined_call_operand.vmem [shape: bf16[128,128], index: 1, kind: input, shape index: {}]
  %s2 = inlined_call_operand.vmem [shape: bf16[128,128], index: 2, kind: input, shape index: {}]
  %s3 = inlined_call_operand.vmem [shape: bf16[2,128,128], index: 3, kind: input, shape index: {}]
  %s4 = inlined_call_operand.vmem [shape: f32[3,1,128], index: 4, kind: input, shape index: {}]
  %s5 = inlined_call_operand.vmem [shape: bf16[8,128], index: 5, kind: input, shape index: {}]
  %s6 = inlined_call_operand.vmem [shape: f32[8,1], index: 6, kind: input, shape index: {}]
  %s7 = inlined_call_operand.vmem [shape: bf16[128,128], index: 7, kind: input, shape index: {}]
  %s8 = inlined_call_operand.vmem [shape: f32[1,128], index: 8, kind: input, shape index: {}]
  %s9 = inlined_call_operand.vmem [shape: f32[8,128], index: 9, kind: output, shape index: {}]
  %s10 = sld [smem:[#allocation0]]
  $region109: #{gcn_forward.1} parent=0
    _
  %s12 = ssub.s32 1, %s10
  %s13 = scalar_select 0, %s12, %s10
  loop: start=0, step=1, limit=5
  $region2: #{gcn_forward.1} parent=0 // loop_pre_header
    _
  $region3: #{gcn_forward.1} parent=0 // loop_header
    %s15 = sphi 0, %s19
    %p16 = scmp.ge.s32.totalorder %s15, 5
    %s22 = sphi 0, %s41
    %s23 = sphi 0, %s37
    %s24 = sphi 0, %s33
    %s25 = sphi 0, %s22
    %s26 = sphi 0, %s23
    %s27 = sphi 0, %s24
    %s28 = sphi 0, %s25
    %s29 = sphi 0, %s26
    %s30 = sphi 0, %s27
    %s46 = sphi 0, %s48
    %s49 = sphi 0, %s46
    %s50 = sphi 0, %s49
    %s66 = sphi 0, %s50
    %s76 = sphi 0, %s78
    %s79 = sphi 0, %s76
    %s80 = sphi 0, %s79
    %s96 = sphi 0, %s80
    %s100 = sphi 0, %s100
    %s102 = sphi 0, %s100
    %s103 = sphi 0, %s102
    %s117 = sphi 0, %s103
    %s129 = sphi 0, %s131
    %s132 = sphi 0, %s129
    %s133 = sphi 0, %s132
    %s149 = sphi 0, %s133
    %s155 = sphi 0, %s157
    %s158 = sphi 0, %s155
    %s159 = sphi 0, %s158
    %s175 = sphi 0, %s159
    %s185 = sphi 0, %s187
    %s188 = sphi 0, %s185
    %s189 = sphi 0, %s188
    %s205 = sphi 0, %s189
    %s209 = sphi 0, %s209
    %s211 = sphi 0, %s209
    %s212 = sphi 0, %s211
    %s226 = sphi 0, %s212
    %s230 = sphi 0, %s230
    %s232 = sphi 0, %s230
    %s233 = sphi 0, %s232
    %s247 = sphi 0, %s233
    %s251 = sphi 0, %s251
    %s253 = sphi 0, %s251
    %s254 = sphi 0, %s253
    %s268 = sphi 0, %s254
    %s272 = sphi 0, %s272
    %s274 = sphi 0, %s272
    %s275 = sphi 0, %s274
    %s289 = sphi 0, %s275
  $region4: #{gcn_forward.1} parent=0 // loop_header_branch
    %18 = sbr.rel (%p16) target = $region8
  $region5: #{gcn_forward.1} parent=0 // loop_body
    %s20 = ssub.s32 %s15, 1
    %s21 = ssub.s32 %s15, 2
    %s31 = sadd.s32 1, %s24
    %p32 = scmp.ge.s32.totalorder %s31, 1
    %s33 = scalar_select %p32, 0, %s31
    %s34 = sadd.s32 1, %s23
    %s35 = scalar_select %p32, %s34, %s23
    %p36 = scmp.ge.s32.totalorder %s35, 1
    %s37 = scalar_select %p36, 0, %s35
    %s38 = sadd.s32 1, %s22
    %s39 = scalar_select %p36, %s38, %s22
    %p40 = scmp.ge.s32.totalorder %s39, 3
    %s41 = scalar_select %p40, 0, %s39
    %s42 = ssub.s32 %s23, %s37
    %s43 = ssub.s32 %s24, %s33
    %s44 = sor.u32 %s42, %s43
    %p45 = scmp.eq.s32.totalorder %s44, 0
    %s47 = sadd.s32 %s46, 1
    %s48 = scalar_select %p45, %s46, %s47
    %p51 = pneg %p45
    %p52 = scmp.eq.s32.totalorder %s15, 2
    %p53 = por %p51, %p52
    %p54 = scmp.ne.s32.totalorder %s46, %s49
    %p55 = scmp.eq.s32.totalorder %s15, 0
    %p56 = por %p54, %p55
    %p57 = scmp.ne.s32.totalorder %s46, %s49
    %p58 = scmp.eq.s32.totalorder %s20, 2
    %p59 = por %p57, %p58
    %p60 = scmp.ne.s32.totalorder %s49, %s50
    %p61 = scmp.eq.s32.totalorder %s20, 0
    %p62 = por %p60, %p61
    %p63 = scmp.ne.s32.totalorder %s49, %s50
    %p64 = scmp.eq.s32.totalorder %s21, 2
    %p65 = por %p63, %p64
    %p67 = scmp.ne.s32.totalorder %s50, %s66
    %p68 = scmp.eq.s32.totalorder %s21, 0
    %p69 = por %p67, %p68
    %p70 = scmp.eq.s32.totalorder %s22, 0
    %s71 = scalar_select %p70, %s24, 0
    %p72 = scmp.eq.s32.totalorder %s41, 0
    %s73 = scalar_select %p72, %s33, 0
    %s74 = ssub.s32 %s71, %s73
    %p75 = scmp.eq.s32.totalorder %s74, 0
    %s77 = sadd.s32 %s76, 1
    %s78 = scalar_select %p75, %s76, %s77
    %p81 = pneg %p75
    %p82 = scmp.eq.s32.totalorder %s15, 2
    %p83 = por %p81, %p82
    %p84 = scmp.ne.s32.totalorder %s76, %s79
    %p85 = scmp.eq.s32.totalorder %s15, 0
    %p86 = por %p84, %p85
    %p87 = scmp.ne.s32.totalorder %s76, %s79
    %p88 = scmp.eq.s32.totalorder %s20, 2
    %p89 = por %p87, %p88
    %p90 = scmp.ne.s32.totalorder %s79, %s80
    %p91 = scmp.eq.s32.totalorder %s20, 0
    %p92 = por %p90, %p91
    %p93 = scmp.ne.s32.totalorder %s79, %s80
    %p94 = scmp.eq.s32.totalorder %s21, 2
    %p95 = por %p93, %p94
    %p97 = scmp.ne.s32.totalorder %s80, %s96
    %p98 = scmp.eq.s32.totalorder %s21, 0
    %p99 = por %p97, %p98
    %s101 = sadd.s32 %s100, 1
    %p104 = scmp.eq.s32.totalorder %s15, 2
    %p105 = scmp.ne.s32.totalorder %s100, %s102
    %p106 = scmp.eq.s32.totalorder %s15, 0
    %p107 = por %p105, %p106
    %p108 = scmp.ne.s32.totalorder %s100, %s102
    %p109 = scmp.eq.s32.totalorder %s20, 2
    %p110 = por %p108, %p109
    %p111 = scmp.ne.s32.totalorder %s102, %s103
    %p112 = scmp.eq.s32.totalorder %s20, 0
    %p113 = por %p111, %p112
    %p114 = scmp.ne.s32.totalorder %s102, %s103
    %p115 = scmp.eq.s32.totalorder %s21, 2
    %p116 = por %p114, %p115
    %p118 = scmp.ne.s32.totalorder %s103, %s117
    %p119 = scmp.eq.s32.totalorder %s21, 0
    %p120 = por %p118, %p119
    %p121 = scmp.gt.s32.totalorder %s22, 1
    %s122 = scalar_select %p121, %s22, 1
    %s123 = ssub.s32 %s122, 1
    %p124 = scmp.gt.s32.totalorder %s41, 1
    %s125 = scalar_select %p124, %s41, 1
    %s126 = ssub.s32 %s125, 1
    %s127 = ssub.s32 %s123, %s126
    %p128 = scmp.eq.s32.totalorder %s127, 0
    %s130 = sadd.s32 %s129, 1
    %s131 = scalar_select %p128, %s129, %s130
    %p134 = pneg %p128
    %p135 = scmp.eq.s32.totalorder %s15, 2
    %p136 = por %p134, %p135
    %p137 = scmp.ne.s32.totalorder %s129, %s132
    %p138 = scmp.eq.s32.totalorder %s15, 0
    %p139 = por %p137, %p138
    %p140 = scmp.ne.s32.totalorder %s129, %s132
    %p141 = scmp.eq.s32.totalorder %s20, 2
    %p142 = por %p140, %p141
    %p143 = scmp.ne.s32.totalorder %s132, %s133
    %p144 = scmp.eq.s32.totalorder %s20, 0
    %p145 = por %p143, %p144
    %p146 = scmp.ne.s32.totalorder %s132, %s133
    %p147 = scmp.eq.s32.totalorder %s21, 2
    %p148 = por %p146, %p147
    %p150 = scmp.ne.s32.totalorder %s133, %s149
    %p151 = scmp.eq.s32.totalorder %s21, 0
    %p152 = por %p150, %p151
    %s153 = ssub.s32 %s22, %s41
    %p154 = scmp.eq.s32.totalorder %s153, 0
    %s156 = sadd.s32 %s155, 1
    %s157 = scalar_select %p154, %s155, %s156
    %p160 = pneg %p154
    %p161 = scmp.eq.s32.totalorder %s15, 2
    %p162 = por %p160, %p161
    %p163 = scmp.ne.s32.totalorder %s155, %s158
    %p164 = scmp.eq.s32.totalorder %s15, 0
    %p165 = por %p163, %p164
    %p166 = scmp.ne.s32.totalorder %s155, %s158
    %p167 = scmp.eq.s32.totalorder %s20, 2
    %p168 = por %p166, %p167
    %p169 = scmp.ne.s32.totalorder %s158, %s159
    %p170 = scmp.eq.s32.totalorder %s20, 0
    %p171 = por %p169, %p170
    %p172 = scmp.ne.s32.totalorder %s158, %s159
    %p173 = scmp.eq.s32.totalorder %s21, 2
    %p174 = por %p172, %p173
    %p176 = scmp.ne.s32.totalorder %s159, %s175
    %p177 = scmp.eq.s32.totalorder %s21, 0
    %p178 = por %p176, %p177
    %p179 = scmp.eq.s32.totalorder %s22, 2
    %s180 = scalar_select %p179, %s23, 0
    %p181 = scmp.eq.s32.totalorder %s41, 2
    %s182 = scalar_select %p181, %s37, 0
    %s183 = ssub.s32 %s180, %s182
    %p184 = scmp.eq.s32.totalorder %s183, 0
    %s186 = sadd.s32 %s185, 1
    %s187 = scalar_select %p184, %s185, %s186
    %p190 = pneg %p184
    %p191 = scmp.eq.s32.totalorder %s15, 2
    %p192 = por %p190, %p191
    %p193 = scmp.ne.s32.totalorder %s185, %s188
    %p194 = scmp.eq.s32.totalorder %s15, 0
    %p195 = por %p193, %p194
    %p196 = scmp.ne.s32.totalorder %s185, %s188
    %p197 = scmp.eq.s32.totalorder %s20, 2
    %p198 = por %p196, %p197
    %p199 = scmp.ne.s32.totalorder %s188, %s189
    %p200 = scmp.eq.s32.totalorder %s20, 0
    %p201 = por %p199, %p200
    %p202 = scmp.ne.s32.totalorder %s188, %s189
    %p203 = scmp.eq.s32.totalorder %s21, 2
    %p204 = por %p202, %p203
    %p206 = scmp.ne.s32.totalorder %s189, %s205
    %p207 = scmp.eq.s32.totalorder %s21, 0
    %p208 = por %p206, %p207
    %s210 = sadd.s32 %s209, 1
    %p213 = scmp.eq.s32.totalorder %s15, 2
    %p214 = scmp.ne.s32.totalorder %s209, %s211
    %p215 = scmp.eq.s32.totalorder %s15, 0
    %p216 = por %p214, %p215
    %p217 = scmp.ne.s32.totalorder %s209, %s211
    %p218 = scmp.eq.s32.totalorder %s20, 2
    %p219 = por %p217, %p218
    %p220 = scmp.ne.s32.totalorder %s211, %s212
    %p221 = scmp.eq.s32.totalorder %s20, 0
    %p222 = por %p220, %p221
    %p223 = scmp.ne.s32.totalorder %s211, %s212
    %p224 = scmp.eq.s32.totalorder %s21, 2
    %p225 = por %p223, %p224
    %p227 = scmp.ne.s32.totalorder %s212, %s226
    %p228 = scmp.eq.s32.totalorder %s21, 0
    %p229 = por %p227, %p228
    %s231 = sadd.s32 %s230, 1
    %p234 = scmp.eq.s32.totalorder %s15, 2
    %p235 = scmp.ne.s32.totalorder %s230, %s232
    %p236 = scmp.eq.s32.totalorder %s15, 0
    %p237 = por %p235, %p236
    %p238 = scmp.ne.s32.totalorder %s230, %s232
    %p239 = scmp.eq.s32.totalorder %s20, 2
    %p240 = por %p238, %p239
    %p241 = scmp.ne.s32.totalorder %s232, %s233
    %p242 = scmp.eq.s32.totalorder %s20, 0
    %p243 = por %p241, %p242
    %p244 = scmp.ne.s32.totalorder %s232, %s233
    %p245 = scmp.eq.s32.totalorder %s21, 2
    %p246 = por %p244, %p245
    %p248 = scmp.ne.s32.totalorder %s233, %s247
    %p249 = scmp.eq.s32.totalorder %s21, 0
    %p250 = por %p248, %p249
    %s252 = sadd.s32 %s251, 1
    %p255 = scmp.eq.s32.totalorder %s15, 2
    %p256 = scmp.ne.s32.totalorder %s251, %s253
    %p257 = scmp.eq.s32.totalorder %s15, 0
    %p258 = por %p256, %p257
    %p259 = scmp.ne.s32.totalorder %s251, %s253
    %p260 = scmp.eq.s32.totalorder %s20, 2
    %p261 = por %p259, %p260
    %p262 = scmp.ne.s32.totalorder %s253, %s254
    %p263 = scmp.eq.s32.totalorder %s20, 0
    %p264 = por %p262, %p263
    %p265 = scmp.ne.s32.totalorder %s253, %s254
    %p266 = scmp.eq.s32.totalorder %s21, 2
    %p267 = por %p265, %p266
    %p269 = scmp.ne.s32.totalorder %s254, %s268
    %p270 = scmp.eq.s32.totalorder %s21, 0
    %p271 = por %p269, %p270
    %s273 = sadd.s32 %s272, 1
    %p276 = scmp.eq.s32.totalorder %s15, 2
    %p277 = scmp.ne.s32.totalorder %s272, %s274
    %p278 = scmp.eq.s32.totalorder %s15, 0
    %p279 = por %p277, %p278
    %p280 = scmp.ne.s32.totalorder %s272, %s274
    %p281 = scmp.eq.s32.totalorder %s20, 2
    %p282 = por %p280, %p281
    %p283 = scmp.ne.s32.totalorder %s274, %s275
    %p284 = scmp.eq.s32.totalorder %s20, 0
    %p285 = por %p283, %p284
    %p286 = scmp.ne.s32.totalorder %s274, %s275
    %p287 = scmp.eq.s32.totalorder %s21, 2
    %p288 = por %p286, %p287
    %p290 = scmp.ne.s32.totalorder %s275, %s289
    %p291 = scmp.eq.s32.totalorder %s21, 0
    %p292 = por %p290, %p291
    %p293 = scmp.le.s32.totalorder 1, %s15
    %p294 = scmp.lt.s32.totalorder %s15, 4
    %p295 = pnand %p293, %p294
    %p296 = pneg %p295
    // Predicated region
    $region9: #{gcn_forward.1} parent=5 // pred_check
      _
    $region10: #{gcn_forward.1} parent=5 // pred_check_branch
      %298 = sbr.rel (%p295) target = $region12
    $region11: #{gcn_forward.1} parent=5 // pred_region
      %s299 = ssub.s32 %s15, 1
      // Predicated region
      $region13: #{gcn_forward.1} parent=11 // pred_check
        %p300 = pneg %p62
      $region14: #{gcn_forward.1} parent=11 // pred_check_branch
        %302 = sbr.rel (%p300) target = $region16
      $region15: #{gcn_forward.1} parent=11 // pred_region
        %s303 = smul.u32 16, %s26
        %p304 = scmp.lt.s32.totalorder %s303, 15
        %s305 = scalar_select %p304, %s303, 15
        %p306 = scmp.lt.s32.totalorder %s27, 0
        %s307 = scalar_select %p306, %s27, 0
        %s308 = sadd.s32 %s307, %s305
        %s309 = smul.addr %s308, 4
        %s310 = scalar_lea.vmem %s0, %s309
        %s311 = smul.u32 16, %s26
      $region16: #{gcn_forward.1} parent=11 // pred_fallthru
        _
      // Predicated region
      $region17: #{gcn_forward.1} parent=11 // pred_check
        %p312 = pneg %p113
      $region18: #{gcn_forward.1} parent=11 // pred_check_branch
        %314 = sbr.rel (%p312) target = $region20
      $region19: #{gcn_forward.1} parent=11 // pred_region
        _
      $region20: #{gcn_forward.1} parent=11 // pred_fallthru
        _
      // Predicated region
      $region21: #{gcn_forward.1} parent=11 // pred_check
        %p315 = pneg %p222
      $region22: #{gcn_forward.1} parent=11 // pred_check_branch
        %317 = sbr.rel (%p315) target = $region24
      $region23: #{gcn_forward.1} parent=11 // pred_region
        _
      $region24: #{gcn_forward.1} parent=11 // pred_fallthru
        _
      // Predicated region
      $region25: #{gcn_forward.1} parent=11 // pred_check
        %p318 = pneg %p243
      $region26: #{gcn_forward.1} parent=11 // pred_check_branch
        %320 = sbr.rel (%p318) target = $region28
      $region27: #{gcn_forward.1} parent=11 // pred_region
        _
      $region28: #{gcn_forward.1} parent=11 // pred_fallthru
        _
      // Predicated region
      $region29: #{gcn_forward.1} parent=11 // pred_check
        %p321 = pneg %p264
      $region30: #{gcn_forward.1} parent=11 // pred_check_branch
        %323 = sbr.rel (%p321) target = $region32
      $region31: #{gcn_forward.1} parent=11 // pred_region
        _
      $region32: #{gcn_forward.1} parent=11 // pred_fallthru
        _
    $region12: #{gcn_forward.1} parent=5 // pred_fallthru
      _
    %p324 = scmp.lt.s32.totalorder %s15, 3
    // Predicated region
    $region33: #{gcn_forward.1} parent=5 // pred_check
      %p325 = pneg %p324
    $region34: #{gcn_forward.1} parent=5 // pred_check_branch
      %327 = sbr.rel (%p325) target = $region36
    $region35: #{gcn_forward.1} parent=5 // pred_region
      // Predicated region
      $region37: #{gcn_forward.1} parent=35 // pred_check
        %p328 = pneg %p86
      $region38: #{gcn_forward.1} parent=35 // pred_check_branch
        %330 = sbr.rel (%p328) target = $region40
      $region39: #{gcn_forward.1} parent=35 // pred_region
        %p331 = scmp.eq.s32.totalorder %s22, 0
        %s332 = scalar_select %p331, %s24, 0
        %s333 = smul.u32 16, %s332
        %p334 = scmp.lt.s32.totalorder %s333, 15
        %s335 = scalar_select %p334, %s333, 15
        %s336 = smul.addr %s335, 4
        %s337 = scalar_lea.vmem %s1, %s336
        %p338 = scmp.eq.s32.totalorder %s22, 0
        %s339 = scalar_select %p338, %s24, 0
        %s340 = smul.u32 16, %s339
      $region40: #{gcn_forward.1} parent=35 // pred_fallthru
        _
      // Predicated region
      $region41: #{gcn_forward.1} parent=35 // pred_check
        %p341 = pneg %p139
      $region42: #{gcn_forward.1} parent=35 // pred_check_branch
        %343 = sbr.rel (%p341) target = $region44
      $region43: #{gcn_forward.1} parent=35 // pred_region
        %p344 = scmp.gt.s32.totalorder %s22, 1
        %s345 = scalar_select %p344, %s22, 1
        %s346 = ssub.s32 %s345, 1
        %p347 = scmp.lt.s32.totalorder %s346, 1
        %s348 = scalar_select %p347, %s346, 1
        %s349 = smul.addr %s348, 16
        %s350 = smul.addr %s349, 4
        %s351 = scalar_lea.vmem %s3, %s350
        %p352 = scmp.gt.s32.totalorder %s22, 1
        %s353 = scalar_select %p352, %s22, 1
        %s354 = ssub.s32 %s353, 1
      $region44: #{gcn_forward.1} parent=35 // pred_fallthru
        _
      // Predicated region
      $region45: #{gcn_forward.1} parent=35 // pred_check
        %p355 = pneg %p165
      $region46: #{gcn_forward.1} parent=35 // pred_check_branch
        %357 = sbr.rel (%p355) target = $region48
      $region47: #{gcn_forward.1} parent=35 // pred_region
        %p358 = scmp.lt.s32.totalorder %s22, 2
        %s359 = scalar_select %p358, %s22, 2
        %s360 = scalar_lea.vmem %s4, %s359
      $region48: #{gcn_forward.1} parent=35 // pred_fallthru
        _
      // Predicated region
      $region49: #{gcn_forward.1} parent=35 // pred_check
        %p361 = pneg %p195
      $region50: #{gcn_forward.1} parent=35 // pred_check_branch
        %363 = sbr.rel (%p361) target = $region52
      $region51: #{gcn_forward.1} parent=35 // pred_region
        %p364 = scmp.eq.s32.totalorder %s22, 2
        %s365 = scalar_select %p364, %s23, 0
        %p366 = scmp.lt.s32.totalorder %s365, 0
        %s367 = scalar_select %p366, %s365, 0
        %s368 = smul.addr %s367, 4
        %s369 = scalar_lea.vmem %s5, %s368
        %p370 = scmp.eq.s32.totalorder %s22, 2
        %s371 = scalar_select %p370, %s23, 0
      $region52: #{gcn_forward.1} parent=35 // pred_fallthru
        _
    $region36: #{gcn_forward.1} parent=5 // pred_fallthru
      _
    %p372 = scmp.le.s32.totalorder 1, %s15
    %p373 = scmp.lt.s32.totalorder %s15, 4
    %p374 = pnand %p372, %p373
    %p375 = pneg %p374
    // Predicated region
    $region53: #{gcn_forward.1} parent=5 // pred_check
      _
    $region54: #{gcn_forward.1} parent=5 // pred_check_branch
      %377 = sbr.rel (%p374) target = $region56
    $region55: #{gcn_forward.1} parent=5 // pred_region
      %s378 = ssub.s32 %s15, 1
      %s379 = smul.u32 16, %s26
      %p380 = scmp.lt.s32.totalorder %s379, 15
      %s381 = scalar_select %p380, %s379, 15
      %p382 = scmp.lt.s32.totalorder %s27, 0
      %s383 = scalar_select %p382, %s27, 0
      %s384 = sadd.s32 %s383, %s381
      %s385 = smul.addr %s384, 4
      %s386 = scalar_lea.vmem %s0, %s385
      %p387 = pneg %p62
      %p388 = pneg %p59
      %p389 = scmp.eq.s32.totalorder %s25, 0
      %s390 = scalar_select %p389, %s27, 0
      %s391 = smul.u32 16, %s390
      %p392 = scmp.lt.s32.totalorder %s391, 15
      %s393 = scalar_select %p392, %s391, 15
      %s394 = smul.addr %s393, 4
      %s395 = scalar_lea.vmem %s1, %s394
      %p396 = pneg %p92
      %p397 = pneg %p89
      %p398 = pneg %p113
      %p399 = pneg %p110
      %p400 = scmp.gt.s32.totalorder %s25, 1
      %s401 = scalar_select %p400, %s25, 1
      %s402 = ssub.s32 %s401, 1
      %p403 = scmp.lt.s32.totalorder %s402, 1
      %s404 = scalar_select %p403, %s402, 1
      %s405 = smul.addr %s404, 16
      %s406 = smul.addr %s405, 4
      %s407 = scalar_lea.vmem %s3, %s406
      %p408 = pneg %p145
      %p409 = pneg %p142
      %p410 = scmp.lt.s32.totalorder %s25, 2
      %s411 = scalar_select %p410, %s25, 2
      %s412 = scalar_lea.vmem %s4, %s411
      %p413 = pneg %p171
      %p414 = pneg %p168
      %p415 = scmp.eq.s32.totalorder %s25, 2
      %s416 = scalar_select %p415, %s26, 0
      %p417 = scmp.lt.s32.totalorder %s416, 0
      %s418 = scalar_select %p417, %s416, 0
      %s419 = smul.addr %s418, 4
      %s420 = scalar_lea.vmem %s5, %s419
      %p421 = pneg %p201
      %p422 = pneg %p198
      %p423 = pneg %p222
      %p424 = pneg %p219
      %p425 = pneg %p243
      %p426 = pneg %p240
      %p427 = pneg %p264
      %p428 = pneg %p261
      %p429 = pneg %p285
      %p430 = pneg %p282
      %s431 = smul.u32 16, %s26
      %p432 = scmp.lt.s32.totalorder %s431, 15
      %s433 = scalar_select %p432, %s431, 15
      %p434 = scmp.lt.s32.totalorder %s27, 0
      %s435 = scalar_select %p434, %s27, 0
      %s436 = sadd.s32 %s435, %s433
      %s437 = smul.addr %s436, 4
      %s438 = scalar_lea.vmem %s0, %s437
      %s439 = smul.u32 16, %s26
      %p440 = scmp.eq.s32.totalorder %s25, 0
      %s441 = scalar_select %p440, %s27, 0
      %s442 = smul.u32 16, %s441
      %p443 = scmp.lt.s32.totalorder %s442, 15
      %s444 = scalar_select %p443, %s442, 15
      %s445 = smul.addr %s444, 4
      %s446 = scalar_lea.vmem %s1, %s445
      %p447 = scmp.eq.s32.totalorder %s25, 0
      %s448 = scalar_select %p447, %s27, 0
      %s449 = smul.u32 16, %s448
      %p450 = scmp.gt.s32.totalorder %s25, 1
      %s451 = scalar_select %p450, %s25, 1
      %s452 = ssub.s32 %s451, 1
      %p453 = scmp.lt.s32.totalorder %s452, 1
      %s454 = scalar_select %p453, %s452, 1
      %s455 = smul.addr %s454, 16
      %s456 = smul.addr %s455, 4
      %s457 = scalar_lea.vmem %s3, %s456
      %p458 = scmp.gt.s32.totalorder %s25, 1
      %s459 = scalar_select %p458, %s25, 1
      %s460 = ssub.s32 %s459, 1
      %p461 = scmp.lt.s32.totalorder %s25, 2
      %s462 = scalar_select %p461, %s25, 2
      %s463 = scalar_lea.vmem %s4, %s462
      %p464 = scmp.eq.s32.totalorder %s25, 2
      %s465 = scalar_select %p464, %s26, 0
      %p466 = scmp.lt.s32.totalorder %s465, 0
      %s467 = scalar_select %p466, %s465, 0
      %s468 = smul.addr %s467, 4
      %s469 = scalar_lea.vmem %s5, %s468
      %p470 = scmp.eq.s32.totalorder %s25, 2
      %s471 = scalar_select %p470, %s26, 0
      %p473 = scmp.lt.s32.totalorder %s25, 0
      %s474 = ssub.s32 0, %s25
      %s475 = scalar_select %p473, %s474, %s25
      %s476 = sand.u32 %s475, 1
      %s477 = ssub.s32 0, %s476
      %s478 = scalar_select %p473, %s477, %s476
      %p479 = scmp.ne.s32.totalorder %s478, 0
      %p480 = scmp.lt.s32.totalorder %s478, 0
      %p481 = pnand %p480, %p479
      %p482 = pneg %p481
      %s483 = sadd.s32 %s478, 2
      %s484 = scalar_select %p482, %s483, %s478
      %s485 = sadd.s32 %s25, 1
      %p486 = scmp.lt.s32.totalorder %s485, 0
      %s487 = ssub.s32 0, %s485
      %s488 = scalar_select %p486, %s487, %s485
      %s489 = sand.u32 %s488, 1
      %s490 = ssub.s32 0, %s489
      %s491 = scalar_select %p486, %s490, %s489
      %p492 = scmp.ne.s32.totalorder %s491, 0
      %p493 = scmp.lt.s32.totalorder %s491, 0
      %p494 = pnand %p493, %p492
      %p495 = pneg %p494
      %s496 = sadd.s32 %s491, 2
      %s497 = scalar_select %p495, %s496, %s491
      %p498 = scmp.eq.s32.totalorder %s25, 0
      %p499 = scmp.eq.s32.totalorder %s26, 0
      %p500 = pnand %p498, %p499
      %p501 = pneg %p500
      %p502 = scmp.eq.s32.totalorder %s27, 0
      %p503 = pnand %p501, %p502
      %p504 = pneg %p503
      // Predicated region
      $region57: #{gcn_forward.1} parent=55 // pred_check
        _
      $region58: #{gcn_forward.1} parent=55 // pred_check_branch
        %506 = sbr.rel (%p503) target = $region60
      $region59: #{gcn_forward.1} parent=55 // pred_region
        %507 = vst [vmem:[#allocation5] sm:$0xff] 0.0
      $region60: #{gcn_forward.1} parent=55 // pred_fallthru
        _
      // Predicated region
      $region61: #{gcn_forward.1} parent=55 // pred_check
        %p508 = pneg %p498
      $region62: #{gcn_forward.1} parent=55 // pred_check_branch
        %510 = sbr.rel (%p508) target = $region64
      $region63: #{gcn_forward.1} parent=55 // pred_region
        // Predicated region
        $region65: #{gcn_forward.1} parent=63 // pred_check
          %p511 = pneg %p502
        $region66: #{gcn_forward.1} parent=63 // pred_check_branch
          %513 = sbr.rel (%p511) target = $region68
        $region67: #{gcn_forward.1} parent=63 // pred_region
          %514 = vst [vmem:[#allocation3] sm:$0xff] 0.0
          %515 = vst [vmem:[#allocation3 + $0x8] sm:$0xff] 0.0
          %516 = vst [vmem:[#allocation3 + $0x10] sm:$0xff] 0.0
          %517 = vst [vmem:[#allocation3 + $0x18] sm:$0xff] 0.0
          %518 = vst [vmem:[#allocation3 + $0x20] sm:$0xff] 0.0
          %519 = vst [vmem:[#allocation3 + $0x28] sm:$0xff] 0.0
          %520 = vst [vmem:[#allocation3 + $0x30] sm:$0xff] 0.0
          %521 = vst [vmem:[#allocation3 + $0x38] sm:$0xff] 0.0
          %522 = vst [vmem:[#allocation3 + $0x40] sm:$0xff] 0.0
          %523 = vst [vmem:[#allocation3 + $0x48] sm:$0xff] 0.0
          %524 = vst [vmem:[#allocation3 + $0x50] sm:$0xff] 0.0
          %525 = vst [vmem:[#allocation3 + $0x58] sm:$0xff] 0.0
          %526 = vst [vmem:[#allocation3 + $0x60] sm:$0xff] 0.0
          %527 = vst [vmem:[#allocation3 + $0x68] sm:$0xff] 0.0
          %528 = vst [vmem:[#allocation3 + $0x70] sm:$0xff] 0.0
          %529 = vst [vmem:[#allocation3 + $0x78] sm:$0xff] 0.0
        $region68: #{gcn_forward.1} parent=63 // pred_fallthru
          _
        %v530 = vld [vmem:[#allocation3] sm:$0xff]
        %v531 = vld [vmem:[#allocation3 + $0x8] sm:$0xff]
        %v532 = vld [vmem:[#allocation3 + $0x10] sm:$0xff]
        %v533 = vld [vmem:[#allocation3 + $0x18] sm:$0xff]
        %v534 = vld [vmem:[#allocation3 + $0x20] sm:$0xff]
        %v535 = vld [vmem:[#allocation3 + $0x28] sm:$0xff]
        %v536 = vld [vmem:[#allocation3 + $0x30] sm:$0xff]
        %v537 = vld [vmem:[#allocation3 + $0x38] sm:$0xff]
        %v538 = vld [vmem:[#allocation3 + $0x40] sm:$0xff]
        %v539 = vld [vmem:[#allocation3 + $0x48] sm:$0xff]
        %v540 = vld [vmem:[#allocation3 + $0x50] sm:$0xff]
        %v541 = vld [vmem:[#allocation3 + $0x58] sm:$0xff]
        %v542 = vld [vmem:[#allocation3 + $0x60] sm:$0xff]
        %v543 = vld [vmem:[#allocation3 + $0x68] sm:$0xff]
        %v544 = vld [vmem:[#allocation3 + $0x70] sm:$0xff]
        %v545 = vld [vmem:[#allocation3 + $0x78] sm:$0xff]
        %v546 = vld [vmem:[%s438] sm:$0xf]
        %v547 = vld [vmem:[%s438 + $0x4] sm:$0xf]
        %v548 = vld [vmem:[%s438 + $0x8] sm:$0xf]
        %v549 = vld [vmem:[%s438 + $0xc] sm:$0xf]
        %v550 = vld [vmem:[%s438 + $0x10] sm:$0xf]
        %v551 = vld [vmem:[%s438 + $0x14] sm:$0xf]
        %v552 = vld [vmem:[%s438 + $0x18] sm:$0xf]
        %v553 = vld [vmem:[%s438 + $0x1c] sm:$0xf]
        %v554 = vld [vmem:[%s438 + $0x20] sm:$0xf]
        %v555 = vld [vmem:[%s438 + $0x24] sm:$0xf]
        %v556 = vld [vmem:[%s438 + $0x28] sm:$0xf]
        %v557 = vld [vmem:[%s438 + $0x2c] sm:$0xf]
        %v558 = vld [vmem:[%s438 + $0x30] sm:$0xf]
        %v559 = vld [vmem:[%s438 + $0x34] sm:$0xf]
        %v560 = vld [vmem:[%s438 + $0x38] sm:$0xf]
        %v561 = vld [vmem:[%s438 + $0x3c] sm:$0xf]
        %v562 = vld [vmem:[%s446] sm:$0xf]
        %v563 = vld [vmem:[%s446 + $0x4] sm:$0xf]
        %v564 = vld [vmem:[%s446 + $0x8] sm:$0xf]
        %v565 = vld [vmem:[%s446 + $0xc] sm:$0xf]
        %v566 = vld [vmem:[%s446 + $0x10] sm:$0xf]
        %v567 = vld [vmem:[%s446 + $0x14] sm:$0xf]
        %v568 = vld [vmem:[%s446 + $0x18] sm:$0xf]
        %v569 = vld [vmem:[%s446 + $0x1c] sm:$0xf]
        %v570 = vld [vmem:[%s446 + $0x20] sm:$0xf]
        %v571 = vld [vmem:[%s446 + $0x24] sm:$0xf]
        %v572 = vld [vmem:[%s446 + $0x28] sm:$0xf]
        %v573 = vld [vmem:[%s446 + $0x2c] sm:$0xf]
        %v574 = vld [vmem:[%s446 + $0x30] sm:$0xf]
        %v575 = vld [vmem:[%s446 + $0x34] sm:$0xf]
        %v576 = vld [vmem:[%s446 + $0x38] sm:$0xf]
        %v577 = vld [vmem:[%s446 + $0x3c] sm:$0xf]
        %v594 = vunpack.c.l.b16 %v546
        %v595 = vunpack.c.l.b16 %v547
        %v596 = vunpack.c.l.b16 %v548
        %v597 = vunpack.c.l.b16 %v549
        %v598 = vunpack.c.l.b16 %v550
        %v599 = vunpack.c.l.b16 %v551
        %v600 = vunpack.c.l.b16 %v552
        %v601 = vunpack.c.l.b16 %v553
        %v602 = vunpack.c.l.b16 %v554
        %v603 = vunpack.c.l.b16 %v555
        %v604 = vunpack.c.l.b16 %v556
        %v605 = vunpack.c.l.b16 %v557
        %v606 = vunpack.c.l.b16 %v558
        %v607 = vunpack.c.l.b16 %v559
        %v608 = vunpack.c.l.b16 %v560
        %v609 = vunpack.c.l.b16 %v561
        %v610 = vpack.c.b16 %v595, %v594
        %v611 = vpack.c.b16 %v597, %v596
        %v612 = vpack.c.b16 %v599, %v598
        %v613 = vpack.c.b16 %v601, %v600
        %v614 = vpack.c.b16 %v603, %v602
        %v615 = vpack.c.b16 %v605, %v604
        %v616 = vpack.c.b16 %v607, %v606
        %v617 = vpack.c.b16 %v609, %v608
        %v642 = vunpack.c.l.b16 %v562
        %v643 = vunpack.c.l.b16 %v563
        %v644 = vunpack.c.l.b16 %v564
        %v645 = vunpack.c.l.b16 %v565
        %v646 = vunpack.c.l.b16 %v566
        %v647 = vunpack.c.l.b16 %v567
        %v648 = vunpack.c.l.b16 %v568
        %v649 = vunpack.c.l.b16 %v569
        %v650 = vunpack.c.l.b16 %v570
        %v651 = vunpack.c.l.b16 %v571
        %v652 = vunpack.c.l.b16 %v572
        %v653 = vunpack.c.l.b16 %v573
        %v654 = vunpack.c.l.b16 %v574
        %v655 = vunpack.c.l.b16 %v575
        %v656 = vunpack.c.l.b16 %v576
        %v657 = vunpack.c.l.b16 %v577
        %v658 = vpack.c.b16 %v643, %v642
        %v659 = vpack.c.b16 %v645, %v644
        %v660 = vpack.c.b16 %v647, %v646
        %v661 = vpack.c.b16 %v649, %v648
        %v662 = vpack.c.b16 %v651, %v650
        %v663 = vpack.c.b16 %v653, %v652
        %v664 = vpack.c.b16 %v655, %v654
        %v665 = vpack.c.b16 %v657, %v656
        %674 = vmatprep.subr.bf16.mxu0 0
        %675 = vmatpush1.bf16.msra.mxu0 %v658
        %676 = vmatprep.subr.bf16.mxu0 0
        %677 = vmatpush1.bf16.msra.mxu0 %v659
        %678 = vmatprep.subr.bf16.mxu0 0
        %679 = vmatpush1.bf16.msra.mxu0 %v660
        %680 = vmatprep.subr.bf16.mxu0 0
        %681 = vmatpush1.bf16.msra.mxu0 %v661
        %682 = vmatprep.subr.bf16.mxu0 0
        %683 = vmatpush1.bf16.msra.mxu0 %v662
        %684 = vmatprep.subr.bf16.mxu0 0
        %685 = vmatpush1.bf16.msra.mxu0 %v663
        %686 = vmatprep.subr.bf16.mxu0 0
        %687 = vmatpush1.bf16.msra.mxu0 %v664
        %688 = vmatprep.subr.bf16.mxu0 0
        %689 = vmatpush1.bf16.msra.mxu0 %v665
        %690 = vmatprep.subr.bf16.mxu0 0
        %691 = vmatpush1.bf16.msra.mxu0 0
        %692 = vmatprep.subr.bf16.mxu0 0
        %693 = vmatpush1.bf16.msra.mxu0 0
        %694 = vmatprep.subr.bf16.mxu0 0
        %695 = vmatpush1.bf16.msra.mxu0 0
        %696 = vmatprep.subr.bf16.mxu0 0
        %697 = vmatpush1.bf16.msra.mxu0 0
        %698 = vmatprep.subr.bf16.mxu0 0
        %699 = vmatpush1.bf16.msra.mxu0 0
        %700 = vmatprep.subr.bf16.mxu0 0
        %701 = vmatpush1.bf16.msra.mxu0 0
        %702 = vmatprep.subr.bf16.mxu0 0
        %703 = vmatpush1.bf16.msra.mxu0 0
        %704 = vmatprep.subr.bf16.mxu0 0
        %705 = vmatpush1.bf16.msra.mxu0 0
        %706 = vmatprep.mubr.bf16.mxu0 0
        %707 = vmatmul.mubr.bf16.gmra.mrb[0].mxu0 %v610
        %v708 = vpop.f32.mrb[0].mxu0
        %v709 = vadd.f32 0.0, %v708
        %v710 = vpop.f32.mrb[0].mxu0
        %v711 = vpop.f32.mrb[0].mxu0
        %v712 = vadd.f32 0.0, %v711
        %v713 = vpop.f32.mrb[0].mxu0
        %714 = vmatprep.mubr.bf16.mxu0 0
        %715 = vmatmul.mubr.bf16.gmra.mrb[0].mxu0 %v611
        %v716 = vpop.f32.mrb[0].mxu0
        %v717 = vadd.f32 0.0, %v716
        %v718 = vpop.f32.mrb[0].mxu0
        %v719 = vpop.f32.mrb[0].mxu0
        %v720 = vadd.f32 0.0, %v719
        %v721 = vpop.f32.mrb[0].mxu0
        %722 = vmatprep.mubr.bf16.mxu0 0
        %723 = vmatmul.mubr.bf16.gmra.mrb[0].mxu0 %v612
        %v724 = vpop.f32.mrb[0].mxu0
        %v725 = vadd.f32 0.0, %v724
        %v726 = vpop.f32.mrb[0].mxu0
        %v727 = vpop.f32.mrb[0].mxu0
        %v728 = vadd.f32 0.0, %v727
        %v729 = vpop.f32.mrb[0].mxu0
        %730 = vmatprep.mubr.bf16.mxu0 0
        %731 = vmatmul.mubr.bf16.gmra.mrb[0].mxu0 %v613
        %v732 = vpop.f32.mrb[0].mxu0
        %v733 = vadd.f32 0.0, %v732
        %v734 = vpop.f32.mrb[0].mxu0
        %v735 = vpop.f32.mrb[0].mxu0
        %v736 = vadd.f32 0.0, %v735
        %v737 = vpop.f32.mrb[0].mxu0
        %738 = vmatprep.mubr.bf16.mxu0 0
        %739 = vmatmul.mubr.bf16.gmra.mrb[0].mxu0 %v614
        %v740 = vpop.f32.mrb[0].mxu0
        %v741 = vadd.f32 0.0, %v740
        %v742 = vpop.f32.mrb[0].mxu0
        %v743 = vpop.f32.mrb[0].mxu0
        %v744 = vadd.f32 0.0, %v743
        %v745 = vpop.f32.mrb[0].mxu0
        %746 = vmatprep.mubr.bf16.mxu0 0
        %747 = vmatmul.mubr.bf16.gmra.mrb[0].mxu0 %v615
        %v748 = vpop.f32.mrb[0].mxu0
        %v749 = vadd.f32 0.0, %v748
        %v750 = vpop.f32.mrb[0].mxu0
        %v751 = vpop.f32.mrb[0].mxu0
        %v752 = vadd.f32 0.0, %v751
        %v753 = vpop.f32.mrb[0].mxu0
        %754 = vmatprep.mubr.bf16.mxu0 0
        %755 = vmatmul.mubr.bf16.gmra.mrb[0].mxu0 %v616
        %v756 = vpop.f32.mrb[0].mxu0
        %v757 = vadd.f32 0.0, %v756
        %v758 = vpop.f32.mrb[0].mxu0
        %v759 = vpop.f32.mrb[0].mxu0
        %v760 = vadd.f32 0.0, %v759
        %v761 = vpop.f32.mrb[0].mxu0
        %762 = vmatprep.mubr.bf16.mxu0 0
        %763 = vmatmul.mubr.bf16.gmra.mrb[0].mxu0 %v617
        %v764 = vpop.f32.mrb[0].mxu0
        %v765 = vadd.f32 0.0, %v764
        %v766 = vpop.f32.mrb[0].mxu0
        %v767 = vpop.f32.mrb[0].mxu0
        %v768 = vadd.f32 0.0, %v767
        %v769 = vpop.f32.mrb[0].mxu0
        %770 = vdwg.mxu0
        %v771 = vadd.f32 %v530, %v709
        %v772 = vadd.f32 %v531, %v712
        %v773 = vadd.f32 %v532, %v717
        %v774 = vadd.f32 %v533, %v720
        %v775 = vadd.f32 %v534, %v725
        %v776 = vadd.f32 %v535, %v728
        %v777 = vadd.f32 %v536, %v733
        %v778 = vadd.f32 %v537, %v736
        %v779 = vadd.f32 %v538, %v741
        %v780 = vadd.f32 %v539, %v744
        %v781 = vadd.f32 %v540, %v749
        %v782 = vadd.f32 %v541, %v752
        %v783 = vadd.f32 %v542, %v757
        %v784 = vadd.f32 %v543, %v760
        %v785 = vadd.f32 %v544, %v765
        %v786 = vadd.f32 %v545, %v768
        %787 = vst [vmem:[#allocation3] sm:$0xff] %v771
        %788 = vst [vmem:[#allocation3 + $0x8] sm:$0xff] %v772
        %789 = vst [vmem:[#allocation3 + $0x10] sm:$0xff] %v773
        %790 = vst [vmem:[#allocation3 + $0x18] sm:$0xff] %v774
        %791 = vst [vmem:[#allocation3 + $0x20] sm:$0xff] %v775
        %792 = vst [vmem:[#allocation3 + $0x28] sm:$0xff] %v776
        %793 = vst [vmem:[#allocation3 + $0x30] sm:$0xff] %v777
        %794 = vst [vmem:[#allocation3 + $0x38] sm:$0xff] %v778
        %795 = vst [vmem:[#allocation3 + $0x40] sm:$0xff] %v779
        %796 = vst [vmem:[#allocation3 + $0x48] sm:$0xff] %v780
        %797 = vst [vmem:[#allocation3 + $0x50] sm:$0xff] %v781
        %798 = vst [vmem:[#allocation3 + $0x58] sm:$0xff] %v782
        %799 = vst [vmem:[#allocation3 + $0x60] sm:$0xff] %v783
        %800 = vst [vmem:[#allocation3 + $0x68] sm:$0xff] %v784
        %801 = vst [vmem:[#allocation3 + $0x70] sm:$0xff] %v785
        %802 = vst [vmem:[#allocation3 + $0x78] sm:$0xff] %v786
      $region64: #{gcn_forward.1} parent=55 // pred_fallthru
        _
      %p803 = scmp.gt.s32.totalorder %s25, 0
      // Predicated region
      $region69: #{gcn_forward.1} parent=55 // pred_check
        %p804 = pneg %p803
      $region70: #{gcn_forward.1} parent=55 // pred_check_branch
        %806 = sbr.rel (%p804) target = $region72
      $region71: #{gcn_forward.1} parent=55 // pred_region
        // Predicated region
        $region73: #{gcn_forward.1} parent=71 // pred_check
          %p807 = pneg %p502
        $region74: #{gcn_forward.1} parent=71 // pred_check_branch
          %809 = sbr.rel (%p807) target = $region76
        $region75: #{gcn_forward.1} parent=71 // pred_region
          %810 = vst [vmem:[#allocation4] sm:$0xff] 0.0
          %811 = vst [vmem:[#allocation4 + $0x8] sm:$0xff] 0.0
          %812 = vst [vmem:[#allocation4 + $0x10] sm:$0xff] 0.0
          %813 = vst [vmem:[#allocation4 + $0x18] sm:$0xff] 0.0
          %814 = vst [vmem:[#allocation4 + $0x20] sm:$0xff] 0.0
          %815 = vst [vmem:[#allocation4 + $0x28] sm:$0xff] 0.0
          %816 = vst [vmem:[#allocation4 + $0x30] sm:$0xff] 0.0
          %817 = vst [vmem:[#allocation4 + $0x38] sm:$0xff] 0.0
          %818 = vst [vmem:[#allocation4 + $0x40] sm:$0xff] 0.0
          %819 = vst [vmem:[#allocation4 + $0x48] sm:$0xff] 0.0
          %820 = vst [vmem:[#allocation4 + $0x50] sm:$0xff] 0.0
          %821 = vst [vmem:[#allocation4 + $0x58] sm:$0xff] 0.0
          %822 = vst [vmem:[#allocation4 + $0x60] sm:$0xff] 0.0
          %823 = vst [vmem:[#allocation4 + $0x68] sm:$0xff] 0.0
          %824 = vst [vmem:[#allocation4 + $0x70] sm:$0xff] 0.0
          %825 = vst [vmem:[#allocation4 + $0x78] sm:$0xff] 0.0
        $region76: #{gcn_forward.1} parent=71 // pred_fallthru
          _
        %s826 = smul.u32 %s27, 128
        %s827 = sshra.s32 %s826, 4
        %s828 = sand.u32 %s826, 15
        %s829 = smul.u32 %s497, 8
        %s830 = sadd.s32 %s827, %s829
        %s831 = smul.addr %s830, 8
        %s832 = scalar_lea.vmem [#allocation2], %s831
        %v833 = vld [vmem:[%s832] sm:$0xff]
        %v834 = vld [vmem:[%s832 + $0x8] sm:$0xff]
        %v835 = vld [vmem:[%s832 + $0x10] sm:$0xff]
        %v836 = vld [vmem:[%s832 + $0x18] sm:$0xff]
        %v837 = vld [vmem:[%s832 + $0x20] sm:$0xff]
        %v838 = vld [vmem:[%s832 + $0x28] sm:$0xff]
        %v839 = vld [vmem:[%s832 + $0x30] sm:$0xff]
        %v840 = vld [vmem:[%s832 + $0x38] sm:$0xff]
        %v841 = vld [vmem:[#allocation4] sm:$0xff]
        %v842 = vld [vmem:[#allocation4 + $0x8] sm:$0xff]
        %v843 = vld [vmem:[#allocation4 + $0x10] sm:$0xff]
        %v844 = vld [vmem:[#allocation4 + $0x18] sm:$0xff]
        %v845 = vld [vmem:[#allocation4 + $0x20] sm:$0xff]
        %v846 = vld [vmem:[#allocation4 + $0x28] sm:$0xff]
        %v847 = vld [vmem:[#allocation4 + $0x30] sm:$0xff]
        %v848 = vld [vmem:[#allocation4 + $0x38] sm:$0xff]
        %v849 = vld [vmem:[#allocation4 + $0x40] sm:$0xff]
        %v850 = vld [vmem:[#allocation4 + $0x48] sm:$0xff]
        %v851 = vld [vmem:[#allocation4 + $0x50] sm:$0xff]
        %v852 = vld [vmem:[#allocation4 + $0x58] sm:$0xff]
        %v853 = vld [vmem:[#allocation4 + $0x60] sm:$0xff]
        %v854 = vld [vmem:[#allocation4 + $0x68] sm:$0xff]
        %v855 = vld [vmem:[#allocation4 + $0x70] sm:$0xff]
        %v856 = vld [vmem:[#allocation4 + $0x78] sm:$0xff]
        %v857 = vld [vmem:[%s438] sm:$0xf]
        %v858 = vld [vmem:[%s438 + $0x4] sm:$0xf]
        %v859 = vld [vmem:[%s438 + $0x8] sm:$0xf]
        %v860 = vld [vmem:[%s438 + $0xc] sm:$0xf]
        %v861 = vld [vmem:[%s438 + $0x10] sm:$0xf]
        %v862 = vld [vmem:[%s438 + $0x14] sm:$0xf]
        %v863 = vld [vmem:[%s438 + $0x18] sm:$0xf]
        %v864 = vld [vmem:[%s438 + $0x1c] sm:$0xf]
        %v865 = vld [vmem:[%s438 + $0x20] sm:$0xf]
        %v866 = vld [vmem:[%s438 + $0x24] sm:$0xf]
        %v867 = vld [vmem:[%s438 + $0x28] sm:$0xf]
        %v868 = vld [vmem:[%s438 + $0x2c] sm:$0xf]
        %v869 = vld [vmem:[%s438 + $0x30] sm:$0xf]
        %v870 = vld [vmem:[%s438 + $0x34] sm:$0xf]
        %v871 = vld [vmem:[%s438 + $0x38] sm:$0xf]
        %v872 = vld [vmem:[%s438 + $0x3c] sm:$0xf]
        %v889 = vunpack.c.l.b16 %v857
        %v890 = vunpack.c.l.b16 %v858
        %v891 = vunpack.c.l.b16 %v859
        %v892 = vunpack.c.l.b16 %v860
        %v893 = vunpack.c.l.b16 %v861
        %v894 = vunpack.c.l.b16 %v862
        %v895 = vunpack.c.l.b16 %v863
        %v896 = vunpack.c.l.b16 %v864
        %v897 = vunpack.c.l.b16 %v865
        %v898 = vunpack.c.l.b16 %v866
        %v899 = vunpack.c.l.b16 %v867
        %v900 = vunpack.c.l.b16 %v868
        %v901 = vunpack.c.l.b16 %v869
        %v902 = vunpack.c.l.b16 %v870
        %v903 = vunpack.c.l.b16 %v871
        %v904 = vunpack.c.l.b16 %v872
        %v905 = vpack.c.b16 %v890, %v889
        %v906 = vpack.c.b16 %v892, %v891
        %v907 = vpack.c.b16 %v894, %v893
        %v908 = vpack.c.b16 %v896, %v895
        %v909 = vpack.c.b16 %v898, %v897
        %v910 = vpack.c.b16 %v900, %v899
        %v911 = vpack.c.b16 %v902, %v901
        %v912 = vpack.c.b16 %v904, %v903
        %921 = vmatprep.subr.bf16.mxu0 0
        %922 = vmatpush1.bf16.msra.mxu0 %v833
        %923 = vmatprep.subr.bf16.mxu0 0
        %924 = vmatpush1.bf16.msra.mxu0 %v834
        %925 = vmatprep.subr.bf16.mxu0 0
        %926 = vmatpush1.bf16.msra.mxu0 %v835
        %927 = vmatprep.subr.bf16.mxu0 0
        %928 = vmatpush1.bf16.msra.mxu0 %v836
        %929 = vmatprep.subr.bf16.mxu0 0
        %930 = vmatpush1.bf16.msra.mxu0 %v837
        %931 = vmatprep.subr.bf16.mxu0 0
        %932 = vmatpush1.bf16.msra.mxu0 %v838
        %933 = vmatprep.subr.bf16.mxu0 0
        %934 = vmatpush1.bf16.msra.mxu0 %v839
        %935 = vmatprep.subr.bf16.mxu0 0
        %936 = vmatpush1.bf16.msra.mxu0 %v840
        %937 = vmatprep.subr.bf16.mxu0 0
        %938 = vmatpush1.bf16.msra.mxu0 0
        %939 = vmatprep.subr.bf16.mxu0 0
        %940 = vmatpush1.bf16.msra.mxu0 0
        %941 = vmatprep.subr.bf16.mxu0 0
        %942 = vmatpush1.bf16.msra.mxu0 0
        %943 = vmatprep.subr.bf16.mxu0 0
        %944 = vmatpush1.bf16.msra.mxu0 0
        %945 = vmatprep.subr.bf16.mxu0 0
        %946 = vmatpush1.bf16.msra.mxu0 0
        %947 = vmatprep.subr.bf16.mxu0 0
        %948 = vmatpush1.bf16.msra.mxu0 0
        %949 = vmatprep.subr.bf16.mxu0 0
        %950 = vmatpush1.bf16.msra.mxu0 0
        %951 = vmatprep.subr.bf16.mxu0 0
        %952 = vmatpush1.bf16.msra.mxu0 0
        %953 = vmatprep.mubr.bf16.mxu0 0
        %954 = vmatmul.mubr.bf16.gmra.mrb[0].mxu0 %v905
        %v955 = vpop.f32.mrb[0].mxu0
        %v956 = vadd.f32 0.0, %v955
        %v957 = vpop.f32.mrb[0].mxu0
        %v958 = vpop.f32.mrb[0].mxu0
        %v959 = vadd.f32 0.0, %v958
        %v960 = vpop.f32.mrb[0].mxu0
        %961 = vmatprep.mubr.bf16.mxu0 0
        %962 = vmatmul.mubr.bf16.gmra.mrb[0].mxu0 %v906
        %v963 = vpop.f32.mrb[0].mxu0
        %v964 = vadd.f32 0.0, %v963
        %v965 = vpop.f32.mrb[0].mxu0
        %v966 = vpop.f32.mrb[0].mxu0
        %v967 = vadd.f32 0.0, %v966
        %v968 = vpop.f32.mrb[0].mxu0
        %969 = vmatprep.mubr.bf16.mxu0 0
        %970 = vmatmul.mubr.bf16.gmra.mrb[0].mxu0 %v907
        %v971 = vpop.f32.mrb[0].mxu0
        %v972 = vadd.f32 0.0, %v971
        %v973 = vpop.f32.mrb[0].mxu0
        %v974 = vpop.f32.mrb[0].mxu0
        %v975 = vadd.f32 0.0, %v974
        %v976 = vpop.f32.mrb[0].mxu0
        %977 = vmatprep.mubr.bf16.mxu0 0
        %978 = vmatmul.mubr.bf16.gmra.mrb[0].mxu0 %v908
        %v979 = vpop.f32.mrb[0].mxu0
        %v980 = vadd.f32 0.0, %v979
        %v981 = vpop.f32.mrb[0].mxu0
        %v982 = vpop.f32.mrb[0].mxu0
        %v983 = vadd.f32 0.0, %v982
        %v984 = vpop.f32.mrb[0].mxu0
        %985 = vmatprep.mubr.bf16.mxu0 0
        %986 = vmatmul.mubr.bf16.gmra.mrb[0].mxu0 %v909
        %v987 = vpop.f32.mrb[0].mxu0
        %v988 = vadd.f32 0.0, %v987
        %v989 = vpop.f32.mrb[0].mxu0
        %v990 = vpop.f32.mrb[0].mxu0
        %v991 = vadd.f32 0.0, %v990
        %v992 = vpop.f32.mrb[0].mxu0
        %993 = vmatprep.mubr.bf16.mxu0 0
        %994 = vmatmul.mubr.bf16.gmra.mrb[0].mxu0 %v910
        %v995 = vpop.f32.mrb[0].mxu0
        %v996 = vadd.f32 0.0, %v995
        %v997 = vpop.f32.mrb[0].mxu0
        %v998 = vpop.f32.mrb[0].mxu0
        %v999 = vadd.f32 0.0, %v998
        %v1000 = vpop.f32.mrb[0].mxu0
        %1001 = vmatprep.mubr.bf16.mxu0 0
        %1002 = vmatmul.mubr.bf16.gmra.mrb[0].mxu0 %v911
        %v1003 = vpop.f32.mrb[0].mxu0
        %v1004 = vadd.f32 0.0, %v1003
        %v1005 = vpop.f32.mrb[0].mxu0
        %v1006 = vpop.f32.mrb[0].mxu0
        %v1007 = vadd.f32 0.0, %v1006
        %v1008 = vpop.f32.mrb[0].mxu0
        %1009 = vmatprep.mubr.bf16.mxu0 0
        %1010 = vmatmul.mubr.bf16.gmra.mrb[0].mxu0 %v912
        %v1011 = vpop.f32.mrb[0].mxu0
        %v1012 = vadd.f32 0.0, %v1011
        %v1013 = vpop.f32.mrb[0].mxu0
        %v1014 = vpop.f32.mrb[0].mxu0
        %v1015 = vadd.f32 0.0, %v1014
        %v1016 = vpop.f32.mrb[0].mxu0
        %1017 = vdwg.mxu0
        %v1018 = vadd.f32 %v841, %v956
        %v1019 = vadd.f32 %v842, %v959
        %v1020 = vadd.f32 %v843, %v964
        %v1021 = vadd.f32 %v844, %v967
        %v1022 = vadd.f32 %v845, %v972
        %v1023 = vadd.f32 %v846, %v975
        %v1024 = vadd.f32 %v847, %v980
        %v1025 = vadd.f32 %v848, %v983
        %v1026 = vadd.f32 %v849, %v988
        %v1027 = vadd.f32 %v850, %v991
        %v1028 = vadd.f32 %v851, %v996
        %v1029 = vadd.f32 %v852, %v999
        %v1030 = vadd.f32 %v853, %v1004
        %v1031 = vadd.f32 %v854, %v1007
        %v1032 = vadd.f32 %v855, %v1012
        %v1033 = vadd.f32 %v856, %v1015
        %1034 = vst [vmem:[#allocation4] sm:$0xff] %v1018
        %1035 = vst [vmem:[#allocation4 + $0x8] sm:$0xff] %v1019
        %1036 = vst [vmem:[#allocation4 + $0x10] sm:$0xff] %v1020
        %1037 = vst [vmem:[#allocation4 + $0x18] sm:$0xff] %v1021
        %1038 = vst [vmem:[#allocation4 + $0x20] sm:$0xff] %v1022
        %1039 = vst [vmem:[#allocation4 + $0x28] sm:$0xff] %v1023
        %1040 = vst [vmem:[#allocation4 + $0x30] sm:$0xff] %v1024
        %1041 = vst [vmem:[#allocation4 + $0x38] sm:$0xff] %v1025
        %1042 = vst [vmem:[#allocation4 + $0x40] sm:$0xff] %v1026
        %1043 = vst [vmem:[#allocation4 + $0x48] sm:$0xff] %v1027
        %1044 = vst [vmem:[#allocation4 + $0x50] sm:$0xff] %v1028
        %1045 = vst [vmem:[#allocation4 + $0x58] sm:$0xff] %v1029
        %1046 = vst [vmem:[#allocation4 + $0x60] sm:$0xff] %v1030
        %1047 = vst [vmem:[#allocation4 + $0x68] sm:$0xff] %v1031
        %1048 = vst [vmem:[#allocation4 + $0x70] sm:$0xff] %v1032
        %1049 = vst [vmem:[#allocation4 + $0x78] sm:$0xff] %v1033
      $region72: #{gcn_forward.1} parent=55 // pred_fallthru
        _
      // Predicated region
      $region77: #{gcn_forward.1} parent=55 // pred_check
        %p1050 = pneg %p502
      $region78: #{gcn_forward.1} parent=55 // pred_check_branch
        %1052 = sbr.rel (%p1050) target = $region80
      $region79: #{gcn_forward.1} parent=55 // pred_region
        %v1053 = vld [vmem:[%s463] sm:$0x1]
        %s1054 = smul.u32 %s26, 128
        // Predicated region
        $region81: #{gcn_forward.1} parent=79 // pred_check
          %p1055 = pneg %p498
        $region82: #{gcn_forward.1} parent=79 // pred_check_branch
          %1057 = sbr.rel (%p1055) target = $region84
        $region83: #{gcn_forward.1} parent=79 // pred_region
          %v1058 = vld [vmem:[#allocation3] sm:$0xff]
          %v1059 = vld [vmem:[#allocation3 + $0x8] sm:$0xff]
          %v1060 = vld [vmem:[#allocation3 + $0x10] sm:$0xff]
          %v1061 = vld [vmem:[#allocation3 + $0x18] sm:$0xff]
          %v1062 = vld [vmem:[#allocation3 + $0x20] sm:$0xff]
          %v1063 = vld [vmem:[#allocation3 + $0x28] sm:$0xff]
          %v1064 = vld [vmem:[#allocation3 + $0x30] sm:$0xff]
          %v1065 = vld [vmem:[#allocation3 + $0x38] sm:$0xff]
          %v1066 = vld [vmem:[#allocation3 + $0x40] sm:$0xff]
          %v1067 = vld [vmem:[#allocation3 + $0x48] sm:$0xff]
          %v1068 = vld [vmem:[#allocation3 + $0x50] sm:$0xff]
          %v1069 = vld [vmem:[#allocation3 + $0x58] sm:$0xff]
          %v1070 = vld [vmem:[#allocation3 + $0x60] sm:$0xff]
          %v1071 = vld [vmem:[#allocation3 + $0x68] sm:$0xff]
          %v1072 = vld [vmem:[#allocation3 + $0x70] sm:$0xff]
          %v1073 = vld [vmem:[#allocation3 + $0x78] sm:$0xff]
          %v1074 = vpack.c.bf16 %v1059, %v1058
          %v1075 = vpack.c.bf16 %v1061, %v1060
          %v1076 = vpack.c.bf16 %v1063, %v1062
          %v1077 = vpack.c.bf16 %v1065, %v1064
          %v1078 = vpack.c.bf16 %v1067, %v1066
          %v1079 = vpack.c.bf16 %v1069, %v1068
          %v1080 = vpack.c.bf16 %v1071, %v1070
          %v1081 = vpack.c.bf16 %v1073, %v1072
          %v1082 = vld [vmem:[%s2] sm:$0xf]
          %v1083 = vld [vmem:[%s2 + $0x4] sm:$0xf]
          %v1084 = vld [vmem:[%s2 + $0x8] sm:$0xf]
          %v1085 = vld [vmem:[%s2 + $0xc] sm:$0xf]
          %v1086 = vld [vmem:[%s2 + $0x10] sm:$0xf]
          %v1087 = vld [vmem:[%s2 + $0x14] sm:$0xf]
          %v1088 = vld [vmem:[%s2 + $0x18] sm:$0xf]
          %v1089 = vld [vmem:[%s2 + $0x1c] sm:$0xf]
          %v1090 = vld [vmem:[%s2 + $0x20] sm:$0xf]
          %v1091 = vld [vmem:[%s2 + $0x24] sm:$0xf]
          %v1092 = vld [vmem:[%s2 + $0x28] sm:$0xf]
          %v1093 = vld [vmem:[%s2 + $0x2c] sm:$0xf]
          %v1094 = vld [vmem:[%s2 + $0x30] sm:$0xf]
          %v1095 = vld [vmem:[%s2 + $0x34] sm:$0xf]
          %v1096 = vld [vmem:[%s2 + $0x38] sm:$0xf]
          %v1097 = vld [vmem:[%s2 + $0x3c] sm:$0xf]
          %v1099 = vlaneseq
          %v1100 = vshrl.u32 %v1099, 7
          %v1101 = vsub.s32 0, %v1100
          %v1102 = vrot.slane %v1053, %v1101
          %v1120 = vunpack.c.l.b16 %v1082
          %v1121 = vunpack.c.l.b16 %v1083
          %v1122 = vunpack.c.l.b16 %v1084
          %v1123 = vunpack.c.l.b16 %v1085
          %v1124 = vunpack.c.l.b16 %v1086
          %v1125 = vunpack.c.l.b16 %v1087
          %v1126 = vunpack.c.l.b16 %v1088
          %v1127 = vunpack.c.l.b16 %v1089
          %v1128 = vunpack.c.l.b16 %v1090
          %v1129 = vunpack.c.l.b16 %v1091
          %v1130 = vunpack.c.l.b16 %v1092
          %v1131 = vunpack.c.l.b16 %v1093
          %v1132 = vunpack.c.l.b16 %v1094
          %v1133 = vunpack.c.l.b16 %v1095
          %v1134 = vunpack.c.l.b16 %v1096
          %v1135 = vunpack.c.l.b16 %v1097
          %v1136 = vpack.c.b16 %v1121, %v1120
          %v1137 = vpack.c.b16 %v1123, %v1122
          %v1138 = vpack.c.b16 %v1125, %v1124
          %v1139 = vpack.c.b16 %v1127, %v1126
          %v1140 = vpack.c.b16 %v1129, %v1128
          %v1141 = vpack.c.b16 %v1131, %v1130
          %v1142 = vpack.c.b16 %v1133, %v1132
          %v1143 = vpack.c.b16 %v1135, %v1134
          %1152 = vmatprep.subr.bf16.mxu0 0
          %1153 = vmatpush1.bf16.msra.mxu0 %v1136
          %1154 = vmatprep.subr.bf16.mxu0 0
          %1155 = vmatpush1.bf16.msra.mxu0 %v1137
          %1156 = vmatprep.subr.bf16.mxu0 0
          %1157 = vmatpush1.bf16.msra.mxu0 %v1138
          %1158 = vmatprep.subr.bf16.mxu0 0
          %1159 = vmatpush1.bf16.msra.mxu0 %v1139
          %1160 = vmatprep.subr.bf16.mxu0 0
          %1161 = vmatpush1.bf16.msra.mxu0 %v1140
          %1162 = vmatprep.subr.bf16.mxu0 0
          %1163 = vmatpush1.bf16.msra.mxu0 %v1141
          %1164 = vmatprep.subr.bf16.mxu0 0
          %1165 = vmatpush1.bf16.msra.mxu0 %v1142
          %1166 = vmatprep.subr.bf16.mxu0 0
          %1167 = vmatpush1.bf16.msra.mxu0 %v1143
          %1168 = vmatprep.subr.bf16.mxu0 0
          %1169 = vmatpush1.bf16.msra.mxu0 0
          %1170 = vmatprep.subr.bf16.mxu0 0
          %1171 = vmatpush1.bf16.msra.mxu0 0
          %1172 = vmatprep.subr.bf16.mxu0 0
          %1173 = vmatpush1.bf16.msra.mxu0 0
          %1174 = vmatprep.subr.bf16.mxu0 0
          %1175 = vmatpush1.bf16.msra.mxu0 0
          %1176 = vmatprep.subr.bf16.mxu0 0
          %1177 = vmatpush1.bf16.msra.mxu0 0
          %1178 = vmatprep.subr.bf16.mxu0 0
          %1179 = vmatpush1.bf16.msra.mxu0 0
          %1180 = vmatprep.subr.bf16.mxu0 0
          %1181 = vmatpush1.bf16.msra.mxu0 0
          %1182 = vmatprep.subr.bf16.mxu0 0
          %1183 = vmatpush1.bf16.msra.mxu0 0
          %1184 = vmatprep.mubr.bf16.mxu0 0
          %1185 = vmatmul.mubr.bf16.gmra.mrb[0].mxu0 %v1074
          %v1186 = vpop.f32.mrb[0].mxu0
          %v1187 = vadd.f32 %v1102, %v1186
          %v1188 = vpop.f32.mrb[0].mxu0
          %v1189 = vpop.f32.mrb[0].mxu0
          %v1190 = vadd.f32 %v1102, %v1189
          %v1191 = vpop.f32.mrb[0].mxu0
          %1192 = vmatprep.mubr.bf16.mxu0 0
          %1193 = vmatmul.mubr.bf16.gmra.mrb[0].mxu0 %v1075
          %v1194 = vpop.f32.mrb[0].mxu0
          %v1195 = vadd.f32 %v1102, %v1194
          %v1196 = vpop.f32.mrb[0].mxu0
          %v1197 = vpop.f32.mrb[0].mxu0
          %v1198 = vadd.f32 %v1102, %v1197
          %v1199 = vpop.f32.mrb[0].mxu0
          %1200 = vmatprep.mubr.bf16.mxu0 0
          %1201 = vmatmul.mubr.bf16.gmra.mrb[0].mxu0 %v1076
          %v1202 = vpop.f32.mrb[0].mxu0
          %v1203 = vadd.f32 %v1102, %v1202
          %v1204 = vpop.f32.mrb[0].mxu0
          %v1205 = vpop.f32.mrb[0].mxu0
          %v1206 = vadd.f32 %v1102, %v1205
          %v1207 = vpop.f32.mrb[0].mxu0
          %1208 = vmatprep.mubr.bf16.mxu0 0
          %1209 = vmatmul.mubr.bf16.gmra.mrb[0].mxu0 %v1077
          %v1210 = vpop.f32.mrb[0].mxu0
          %v1211 = vadd.f32 %v1102, %v1210
          %v1212 = vpop.f32.mrb[0].mxu0
          %v1213 = vpop.f32.mrb[0].mxu0
          %v1214 = vadd.f32 %v1102, %v1213
          %v1215 = vpop.f32.mrb[0].mxu0
          %1216 = vmatprep.mubr.bf16.mxu0 0
          %1217 = vmatmul.mubr.bf16.gmra.mrb[0].mxu0 %v1078
          %v1218 = vpop.f32.mrb[0].mxu0
          %v1219 = vadd.f32 %v1102, %v1218
          %v1220 = vpop.f32.mrb[0].mxu0
          %v1221 = vpop.f32.mrb[0].mxu0
          %v1222 = vadd.f32 %v1102, %v1221
          %v1223 = vpop.f32.mrb[0].mxu0
          %1224 = vmatprep.mubr.bf16.mxu0 0
          %1225 = vmatmul.mubr.bf16.gmra.mrb[0].mxu0 %v1079
          %v1226 = vpop.f32.mrb[0].mxu0
          %v1227 = vadd.f32 %v1102, %v1226
          %v1228 = vpop.f32.mrb[0].mxu0
          %v1229 = vpop.f32.mrb[0].mxu0
          %v1230 = vadd.f32 %v1102, %v1229
          %v1231 = vpop.f32.mrb[0].mxu0
          %1232 = vmatprep.mubr.bf16.mxu0 0
          %1233 = vmatmul.mubr.bf16.gmra.mrb[0].mxu0 %v1080
          %v1234 = vpop.f32.mrb[0].mxu0
          %v1235 = vadd.f32 %v1102, %v1234
          %v1236 = vpop.f32.mrb[0].mxu0
          %v1237 = vpop.f32.mrb[0].mxu0
          %v1238 = vadd.f32 %v1102, %v1237
          %v1239 = vpop.f32.mrb[0].mxu0
          %1240 = vmatprep.mubr.bf16.mxu0 0
          %1241 = vmatmul.mubr.bf16.gmra.mrb[0].mxu0 %v1081
          %v1242 = vpop.f32.mrb[0].mxu0
          %v1243 = vadd.f32 %v1102, %v1242
          %v1244 = vpop.f32.mrb[0].mxu0
          %v1245 = vpop.f32.mrb[0].mxu0
          %v1246 = vadd.f32 %v1102, %v1245
          %v1247 = vpop.f32.mrb[0].mxu0
          %1248 = vdwg.mxu0
          %v1249 = vmax.f32 %v1187, 0.0
          %v1250 = vmax.f32 %v1190, 0.0
          %v1251 = vmax.f32 %v1195, 0.0
          %v1252 = vmax.f32 %v1198, 0.0
          %v1253 = vmax.f32 %v1203, 0.0
          %v1254 = vmax.f32 %v1206, 0.0
          %v1255 = vmax.f32 %v1211, 0.0
          %v1256 = vmax.f32 %v1214, 0.0
          %v1257 = vmax.f32 %v1219, 0.0
          %v1258 = vmax.f32 %v1222, 0.0
          %v1259 = vmax.f32 %v1227, 0.0
          %v1260 = vmax.f32 %v1230, 0.0
          %v1261 = vmax.f32 %v1235, 0.0
          %v1262 = vmax.f32 %v1238, 0.0
          %v1263 = vmax.f32 %v1243, 0.0
          %v1264 = vmax.f32 %v1246, 0.0
          %v1265 = vpack.c.bf16 %v1250, %v1249
          %v1266 = vpack.c.bf16 %v1252, %v1251
          %v1267 = vpack.c.bf16 %v1254, %v1253
          %v1268 = vpack.c.bf16 %v1256, %v1255
          %v1269 = vpack.c.bf16 %v1258, %v1257
          %v1270 = vpack.c.bf16 %v1260, %v1259
          %v1271 = vpack.c.bf16 %v1262, %v1261
          %v1272 = vpack.c.bf16 %v1264, %v1263
          %s1273 = sshra.s32 %s1054, 4
          %s1274 = sand.u32 %s1054, 15
          %s1275 = smul.u32 %s484, 8
          %s1276 = sadd.s32 %s1273, %s1275
          %s1277 = smul.addr %s1276, 8
          %s1278 = scalar_lea.vmem [#allocation2], %s1277
          %1279 = vst [vmem:[%s1278] sm:$0xff] %v1265
          %1280 = vst [vmem:[%s1278 + $0x8] sm:$0xff] %v1266
          %1281 = vst [vmem:[%s1278 + $0x10] sm:$0xff] %v1267
          %1282 = vst [vmem:[%s1278 + $0x18] sm:$0xff] %v1268
          %1283 = vst [vmem:[%s1278 + $0x20] sm:$0xff] %v1269
          %1284 = vst [vmem:[%s1278 + $0x28] sm:$0xff] %v1270
          %1285 = vst [vmem:[%s1278 + $0x30] sm:$0xff] %v1271
          %1286 = vst [vmem:[%s1278 + $0x38] sm:$0xff] %v1272
        $region84: #{gcn_forward.1} parent=79 // pred_fallthru
          _
        // Predicated region
        $region85: #{gcn_forward.1} parent=79 // pred_check
          %p1287 = pneg %p803
        $region86: #{gcn_forward.1} parent=79 // pred_check_branch
          %1289 = sbr.rel (%p1287) target = $region88
        $region87: #{gcn_forward.1} parent=79 // pred_region
          %v1290 = vld [vmem:[#allocation4] sm:$0xff]
          %v1291 = vld [vmem:[#allocation4 + $0x8] sm:$0xff]
          %v1292 = vld [vmem:[#allocation4 + $0x10] sm:$0xff]
          %v1293 = vld [vmem:[#allocation4 + $0x18] sm:$0xff]
          %v1294 = vld [vmem:[#allocation4 + $0x20] sm:$0xff]
          %v1295 = vld [vmem:[#allocation4 + $0x28] sm:$0xff]
          %v1296 = vld [vmem:[#allocation4 + $0x30] sm:$0xff]
          %v1297 = vld [vmem:[#allocation4 + $0x38] sm:$0xff]
          %v1298 = vld [vmem:[#allocation4 + $0x40] sm:$0xff]
          %v1299 = vld [vmem:[#allocation4 + $0x48] sm:$0xff]
          %v1300 = vld [vmem:[#allocation4 + $0x50] sm:$0xff]
          %v1301 = vld [vmem:[#allocation4 + $0x58] sm:$0xff]
          %v1302 = vld [vmem:[#allocation4 + $0x60] sm:$0xff]
          %v1303 = vld [vmem:[#allocation4 + $0x68] sm:$0xff]
          %v1304 = vld [vmem:[#allocation4 + $0x70] sm:$0xff]
          %v1305 = vld [vmem:[#allocation4 + $0x78] sm:$0xff]
          %v1306 = vpack.c.bf16 %v1291, %v1290
          %v1307 = vpack.c.bf16 %v1293, %v1292
          %v1308 = vpack.c.bf16 %v1295, %v1294
          %v1309 = vpack.c.bf16 %v1297, %v1296
          %v1310 = vpack.c.bf16 %v1299, %v1298
          %v1311 = vpack.c.bf16 %v1301, %v1300
          %v1312 = vpack.c.bf16 %v1303, %v1302
          %v1313 = vpack.c.bf16 %v1305, %v1304
          %v1314 = vld [vmem:[%s457] sm:$0xf]
          %v1315 = vld [vmem:[%s457 + $0x4] sm:$0xf]
          %v1316 = vld [vmem:[%s457 + $0x8] sm:$0xf]
          %v1317 = vld [vmem:[%s457 + $0xc] sm:$0xf]
          %v1318 = vld [vmem:[%s457 + $0x10] sm:$0xf]
          %v1319 = vld [vmem:[%s457 + $0x14] sm:$0xf]
          %v1320 = vld [vmem:[%s457 + $0x18] sm:$0xf]
          %v1321 = vld [vmem:[%s457 + $0x1c] sm:$0xf]
          %v1322 = vld [vmem:[%s457 + $0x20] sm:$0xf]
          %v1323 = vld [vmem:[%s457 + $0x24] sm:$0xf]
          %v1324 = vld [vmem:[%s457 + $0x28] sm:$0xf]
          %v1325 = vld [vmem:[%s457 + $0x2c] sm:$0xf]
          %v1326 = vld [vmem:[%s457 + $0x30] sm:$0xf]
          %v1327 = vld [vmem:[%s457 + $0x34] sm:$0xf]
          %v1328 = vld [vmem:[%s457 + $0x38] sm:$0xf]
          %v1329 = vld [vmem:[%s457 + $0x3c] sm:$0xf]
          %v1331 = vlaneseq
          %v1332 = vshrl.u32 %v1331, 7
          %v1333 = vsub.s32 0, %v1332
          %v1334 = vrot.slane %v1053, %v1333
          %v1352 = vunpack.c.l.b16 %v1314
          %v1353 = vunpack.c.l.b16 %v1315
          %v1354 = vunpack.c.l.b16 %v1316
          %v1355 = vunpack.c.l.b16 %v1317
          %v1356 = vunpack.c.l.b16 %v1318
          %v1357 = vunpack.c.l.b16 %v1319
          %v1358 = vunpack.c.l.b16 %v1320
          %v1359 = vunpack.c.l.b16 %v1321
          %v1360 = vunpack.c.l.b16 %v1322
          %v1361 = vunpack.c.l.b16 %v1323
          %v1362 = vunpack.c.l.b16 %v1324
          %v1363 = vunpack.c.l.b16 %v1325
          %v1364 = vunpack.c.l.b16 %v1326
          %v1365 = vunpack.c.l.b16 %v1327
          %v1366 = vunpack.c.l.b16 %v1328
          %v1367 = vunpack.c.l.b16 %v1329
          %v1368 = vpack.c.b16 %v1353, %v1352
          %v1369 = vpack.c.b16 %v1355, %v1354
          %v1370 = vpack.c.b16 %v1357, %v1356
          %v1371 = vpack.c.b16 %v1359, %v1358
          %v1372 = vpack.c.b16 %v1361, %v1360
          %v1373 = vpack.c.b16 %v1363, %v1362
          %v1374 = vpack.c.b16 %v1365, %v1364
          %v1375 = vpack.c.b16 %v1367, %v1366
          %1384 = vmatprep.subr.bf16.mxu0 0
          %1385 = vmatpush1.bf16.msra.mxu0 %v1368
          %1386 = vmatprep.subr.bf16.mxu0 0
          %1387 = vmatpush1.bf16.msra.mxu0 %v1369
          %1388 = vmatprep.subr.bf16.mxu0 0
          %1389 = vmatpush1.bf16.msra.mxu0 %v1370
          %1390 = vmatprep.subr.bf16.mxu0 0
          %1391 = vmatpush1.bf16.msra.mxu0 %v1371
          %1392 = vmatprep.subr.bf16.mxu0 0
          %1393 = vmatpush1.bf16.msra.mxu0 %v1372
          %1394 = vmatprep.subr.bf16.mxu0 0
          %1395 = vmatpush1.bf16.msra.mxu0 %v1373
          %1396 = vmatprep.subr.bf16.mxu0 0
          %1397 = vmatpush1.bf16.msra.mxu0 %v1374
          %1398 = vmatprep.subr.bf16.mxu0 0
          %1399 = vmatpush1.bf16.msra.mxu0 %v1375
          %1400 = vmatprep.subr.bf16.mxu0 0
          %1401 = vmatpush1.bf16.msra.mxu0 0
          %1402 = vmatprep.subr.bf16.mxu0 0
          %1403 = vmatpush1.bf16.msra.mxu0 0
          %1404 = vmatprep.subr.bf16.mxu0 0
          %1405 = vmatpush1.bf16.msra.mxu0 0
          %1406 = vmatprep.subr.bf16.mxu0 0
          %1407 = vmatpush1.bf16.msra.mxu0 0
          %1408 = vmatprep.subr.bf16.mxu0 0
          %1409 = vmatpush1.bf16.msra.mxu0 0
          %1410 = vmatprep.subr.bf16.mxu0 0
          %1411 = vmatpush1.bf16.msra.mxu0 0
          %1412 = vmatprep.subr.bf16.mxu0 0
          %1413 = vmatpush1.bf16.msra.mxu0 0
          %1414 = vmatprep.subr.bf16.mxu0 0
          %1415 = vmatpush1.bf16.msra.mxu0 0
          %1416 = vmatprep.mubr.bf16.mxu0 0
          %1417 = vmatmul.mubr.bf16.gmra.mrb[0].mxu0 %v1306
          %v1418 = vpop.f32.mrb[0].mxu0
          %v1419 = vadd.f32 %v1334, %v1418
          %v1420 = vpop.f32.mrb[0].mxu0
          %v1421 = vpop.f32.mrb[0].mxu0
          %v1422 = vadd.f32 %v1334, %v1421
          %v1423 = vpop.f32.mrb[0].mxu0
          %1424 = vmatprep.mubr.bf16.mxu0 0
          %1425 = vmatmul.mubr.bf16.gmra.mrb[0].mxu0 %v1307
          %v1426 = vpop.f32.mrb[0].mxu0
          %v1427 = vadd.f32 %v1334, %v1426
          %v1428 = vpop.f32.mrb[0].mxu0
          %v1429 = vpop.f32.mrb[0].mxu0
          %v1430 = vadd.f32 %v1334, %v1429
          %v1431 = vpop.f32.mrb[0].mxu0
          %1432 = vmatprep.mubr.bf16.mxu0 0
          %1433 = vmatmul.mubr.bf16.gmra.mrb[0].mxu0 %v1308
          %v1434 = vpop.f32.mrb[0].mxu0
          %v1435 = vadd.f32 %v1334, %v1434
          %v1436 = vpop.f32.mrb[0].mxu0
          %v1437 = vpop.f32.mrb[0].mxu0
          %v1438 = vadd.f32 %v1334, %v1437
          %v1439 = vpop.f32.mrb[0].mxu0
          %1440 = vmatprep.mubr.bf16.mxu0 0
          %1441 = vmatmul.mubr.bf16.gmra.mrb[0].mxu0 %v1309
          %v1442 = vpop.f32.mrb[0].mxu0
          %v1443 = vadd.f32 %v1334, %v1442
          %v1444 = vpop.f32.mrb[0].mxu0
          %v1445 = vpop.f32.mrb[0].mxu0
          %v1446 = vadd.f32 %v1334, %v1445
          %v1447 = vpop.f32.mrb[0].mxu0
          %1448 = vmatprep.mubr.bf16.mxu0 0
          %1449 = vmatmul.mubr.bf16.gmra.mrb[0].mxu0 %v1310
          %v1450 = vpop.f32.mrb[0].mxu0
          %v1451 = vadd.f32 %v1334, %v1450
          %v1452 = vpop.f32.mrb[0].mxu0
          %v1453 = vpop.f32.mrb[0].mxu0
          %v1454 = vadd.f32 %v1334, %v1453
          %v1455 = vpop.f32.mrb[0].mxu0
          %1456 = vmatprep.mubr.bf16.mxu0 0
          %1457 = vmatmul.mubr.bf16.gmra.mrb[0].mxu0 %v1311
          %v1458 = vpop.f32.mrb[0].mxu0
          %v1459 = vadd.f32 %v1334, %v1458
          %v1460 = vpop.f32.mrb[0].mxu0
          %v1461 = vpop.f32.mrb[0].mxu0
          %v1462 = vadd.f32 %v1334, %v1461
          %v1463 = vpop.f32.mrb[0].mxu0
          %1464 = vmatprep.mubr.bf16.mxu0 0
          %1465 = vmatmul.mubr.bf16.gmra.mrb[0].mxu0 %v1312
          %v1466 = vpop.f32.mrb[0].mxu0
          %v1467 = vadd.f32 %v1334, %v1466
          %v1468 = vpop.f32.mrb[0].mxu0
          %v1469 = vpop.f32.mrb[0].mxu0
          %v1470 = vadd.f32 %v1334, %v1469
          %v1471 = vpop.f32.mrb[0].mxu0
          %1472 = vmatprep.mubr.bf16.mxu0 0
          %1473 = vmatmul.mubr.bf16.gmra.mrb[0].mxu0 %v1313
          %v1474 = vpop.f32.mrb[0].mxu0
          %v1475 = vadd.f32 %v1334, %v1474
          %v1476 = vpop.f32.mrb[0].mxu0
          %v1477 = vpop.f32.mrb[0].mxu0
          %v1478 = vadd.f32 %v1334, %v1477
          %v1479 = vpop.f32.mrb[0].mxu0
          %1480 = vdwg.mxu0
          %v1481 = vmax.f32 %v1419, 0.0
          %v1482 = vmax.f32 %v1422, 0.0
          %v1483 = vmax.f32 %v1427, 0.0
          %v1484 = vmax.f32 %v1430, 0.0
          %v1485 = vmax.f32 %v1435, 0.0
          %v1486 = vmax.f32 %v1438, 0.0
          %v1487 = vmax.f32 %v1443, 0.0
          %v1488 = vmax.f32 %v1446, 0.0
          %v1489 = vmax.f32 %v1451, 0.0
          %v1490 = vmax.f32 %v1454, 0.0
          %v1491 = vmax.f32 %v1459, 0.0
          %v1492 = vmax.f32 %v1462, 0.0
          %v1493 = vmax.f32 %v1467, 0.0
          %v1494 = vmax.f32 %v1470, 0.0
          %v1495 = vmax.f32 %v1475, 0.0
          %v1496 = vmax.f32 %v1478, 0.0
          %v1497 = vpack.c.bf16 %v1482, %v1481
          %v1498 = vpack.c.bf16 %v1484, %v1483
          %v1499 = vpack.c.bf16 %v1486, %v1485
          %v1500 = vpack.c.bf16 %v1488, %v1487
          %v1501 = vpack.c.bf16 %v1490, %v1489
          %v1502 = vpack.c.bf16 %v1492, %v1491
          %v1503 = vpack.c.bf16 %v1494, %v1493
          %v1504 = vpack.c.bf16 %v1496, %v1495
          %s1505 = sshra.s32 %s1054, 4
          %s1506 = sand.u32 %s1054, 15
          %s1507 = smul.u32 %s484, 8
          %s1508 = sadd.s32 %s1505, %s1507
          %s1509 = smul.addr %s1508, 8
          %s1510 = scalar_lea.vmem [#allocation2], %s1509
          %1511 = vst [vmem:[%s1510] sm:$0xff] %v1497
          %1512 = vst [vmem:[%s1510 + $0x8] sm:$0xff] %v1498
          %1513 = vst [vmem:[%s1510 + $0x10] sm:$0xff] %v1499
          %1514 = vst [vmem:[%s1510 + $0x18] sm:$0xff] %v1500
          %1515 = vst [vmem:[%s1510 + $0x20] sm:$0xff] %v1501
          %1516 = vst [vmem:[%s1510 + $0x28] sm:$0xff] %v1502
          %1517 = vst [vmem:[%s1510 + $0x30] sm:$0xff] %v1503
          %1518 = vst [vmem:[%s1510 + $0x38] sm:$0xff] %v1504
        $region88: #{gcn_forward.1} parent=79 // pred_fallthru
          _
        %p1519 = scmp.eq.s32.totalorder %s25, 2
        // Predicated region
        $region89: #{gcn_forward.1} parent=79 // pred_check
          %p1520 = pneg %p1519
        $region90: #{gcn_forward.1} parent=79 // pred_check_branch
          %1522 = sbr.rel (%p1520) target = $region92
        $region91: #{gcn_forward.1} parent=79 // pred_region
          %s1523 = sshra.s32 %s1054, 4
          %s1524 = sand.u32 %s1054, 15
          %s1525 = smul.u32 %s484, 8
          %s1526 = sadd.s32 %s1523, %s1525
          %s1527 = smul.addr %s1526, 8
          %s1528 = scalar_lea.vmem [#allocation2], %s1527
          %v1529 = vld [vmem:[%s1528] sm:$0xff]
          %v1530 = vld [vmem:[%s1528 + $0x8] sm:$0xff]
          %v1531 = vld [vmem:[%s1528 + $0x10] sm:$0xff]
          %v1532 = vld [vmem:[%s1528 + $0x18] sm:$0xff]
          %v1533 = vld [vmem:[%s1528 + $0x20] sm:$0xff]
          %v1534 = vld [vmem:[%s1528 + $0x28] sm:$0xff]
          %v1535 = vld [vmem:[%s1528 + $0x30] sm:$0xff]
          %v1536 = vld [vmem:[%s1528 + $0x38] sm:$0xff]
          %v1537 = vld [vmem:[#allocation5] sm:$0xff]
          %v1538 = vld [vmem:[%s469] sm:$0xf]
          %1539 = vmatprep.subr.bf16.mxu0 0
          %1540 = vmatpush1.bf16.msra.mxu0 %v1529
          %1541 = vmatprep.subr.bf16.mxu0 0
          %1542 = vmatpush1.bf16.msra.mxu0 %v1530
          %1543 = vmatprep.subr.bf16.mxu0 0
          %1544 = vmatpush1.bf16.msra.mxu0 %v1531
          %1545 = vmatprep.subr.bf16.mxu0 0
          %1546 = vmatpush1.bf16.msra.mxu0 %v1532
          %1547 = vmatprep.subr.bf16.mxu0 0
          %1548 = vmatpush1.bf16.msra.mxu0 %v1533
          %1549 = vmatprep.subr.bf16.mxu0 0
          %1550 = vmatpush1.bf16.msra.mxu0 %v1534
          %1551 = vmatprep.subr.bf16.mxu0 0
          %1552 = vmatpush1.bf16.msra.mxu0 %v1535
          %1553 = vmatprep.subr.bf16.mxu0 0
          %1554 = vmatpush1.bf16.msra.mxu0 %v1536
          %1555 = vmatprep.subr.bf16.mxu0 0
          %1556 = vmatpush1.bf16.msra.mxu0 0
          %1557 = vmatprep.subr.bf16.mxu0 0
          %1558 = vmatpush1.bf16.msra.mxu0 0
          %1559 = vmatprep.subr.bf16.mxu0 0
          %1560 = vmatpush1.bf16.msra.mxu0 0
          %1561 = vmatprep.subr.bf16.mxu0 0
          %1562 = vmatpush1.bf16.msra.mxu0 0
          %1563 = vmatprep.subr.bf16.mxu0 0
          %1564 = vmatpush1.bf16.msra.mxu0 0
          %1565 = vmatprep.subr.bf16.mxu0 0
          %1566 = vmatpush1.bf16.msra.mxu0 0
          %1567 = vmatprep.subr.bf16.mxu0 0
          %1568 = vmatpush1.bf16.msra.mxu0 0
          %1569 = vmatprep.subr.bf16.mxu0 0
          %1570 = vmatpush1.bf16.msra.mxu0 0
          %1571 = vmatprep.mubr.bf16.mxu0 0
          %1572 = vmatmul.mubr.bf16.gmra.mrb[0].mxu0 %v1538
          %v1573 = vpop.f32.mrb[0].mxu0
          %v1574 = vadd.f32 0.0, %v1573
          %v1575 = vpop.f32.mrb[0].mxu0
          %v1576 = vpop.f32.mrb[0].mxu0
          %v1577 = vpop.f32.mrb[0].mxu0
          %1578 = vdwg.mxu0
          %v1579 = vadd.f32 %v1537, %v1574
          %1580 = vst [vmem:[#allocation5] sm:$0xff] %v1579
        $region92: #{gcn_forward.1} parent=79 // pred_fallthru
          _
        %p1581 = pnand %p1519, %p499
        %p1582 = pneg %p1581
        // Predicated region
        $region93: #{gcn_forward.1} parent=79 // pred_check
          _
        $region94: #{gcn_forward.1} parent=79 // pred_check_branch
          %1584 = sbr.rel (%p1581) target = $region96
        $region95: #{gcn_forward.1} parent=79 // pred_region
          %v1585 = vld [vmem:[#allocation5] sm:$0xff]
          %v1586 = vld [vmem:[%s6] sm:$0xff]
          %1588 = vset.pattern.permute.xlu0 0
          %1589 = vperm.xlu0 %1588, %v1586
          %v1590 = vpop.permute.xlu0 %1589
          %v1592 = vmul.f32 %v1585, %v1590
          %v1593 = vpack.c.bf16 %v1592, %v1592
          %v1594 = vld [vmem:[%s7] sm:$0xf]
          %v1595 = vld [vmem:[%s7 + $0x4] sm:$0xf]
          %v1596 = vld [vmem:[%s7 + $0x8] sm:$0xf]
          %v1597 = vld [vmem:[%s7 + $0xc] sm:$0xf]
          %v1598 = vld [vmem:[%s7 + $0x10] sm:$0xf]
          %v1599 = vld [vmem:[%s7 + $0x14] sm:$0xf]
          %v1600 = vld [vmem:[%s7 + $0x18] sm:$0xf]
          %v1601 = vld [vmem:[%s7 + $0x1c] sm:$0xf]
          %v1602 = vld [vmem:[%s7 + $0x20] sm:$0xf]
          %v1603 = vld [vmem:[%s7 + $0x24] sm:$0xf]
          %v1604 = vld [vmem:[%s7 + $0x28] sm:$0xf]
          %v1605 = vld [vmem:[%s7 + $0x2c] sm:$0xf]
          %v1606 = vld [vmem:[%s7 + $0x30] sm:$0xf]
          %v1607 = vld [vmem:[%s7 + $0x34] sm:$0xf]
          %v1608 = vld [vmem:[%s7 + $0x38] sm:$0xf]
          %v1609 = vld [vmem:[%s7 + $0x3c] sm:$0xf]
          %v1610 = vld [vmem:[%s8] sm:$0x1]
          %v1612 = vlaneseq
          %v1613 = vshrl.u32 %v1612, 7
          %v1614 = vsub.s32 0, %v1613
          %v1615 = vrot.slane %v1610, %v1614
          %v1633 = vunpack.c.l.b16 %v1594
          %v1634 = vunpack.c.l.b16 %v1595
          %v1635 = vunpack.c.l.b16 %v1596
          %v1636 = vunpack.c.l.b16 %v1597
          %v1637 = vunpack.c.l.b16 %v1598
          %v1638 = vunpack.c.l.b16 %v1599
          %v1639 = vunpack.c.l.b16 %v1600
          %v1640 = vunpack.c.l.b16 %v1601
          %v1641 = vunpack.c.l.b16 %v1602
          %v1642 = vunpack.c.l.b16 %v1603
          %v1643 = vunpack.c.l.b16 %v1604
          %v1644 = vunpack.c.l.b16 %v1605
          %v1645 = vunpack.c.l.b16 %v1606
          %v1646 = vunpack.c.l.b16 %v1607
          %v1647 = vunpack.c.l.b16 %v1608
          %v1648 = vunpack.c.l.b16 %v1609
          %v1649 = vpack.c.b16 %v1634, %v1633
          %v1650 = vpack.c.b16 %v1636, %v1635
          %v1651 = vpack.c.b16 %v1638, %v1637
          %v1652 = vpack.c.b16 %v1640, %v1639
          %v1653 = vpack.c.b16 %v1642, %v1641
          %v1654 = vpack.c.b16 %v1644, %v1643
          %v1655 = vpack.c.b16 %v1646, %v1645
          %v1656 = vpack.c.b16 %v1648, %v1647
          %1665 = vmatprep.subr.bf16.mxu0 0
          %1666 = vmatpush1.bf16.msra.mxu0 %v1649
          %1667 = vmatprep.subr.bf16.mxu0 0
          %1668 = vmatpush1.bf16.msra.mxu0 %v1650
          %1669 = vmatprep.subr.bf16.mxu0 0
          %1670 = vmatpush1.bf16.msra.mxu0 %v1651
          %1671 = vmatprep.subr.bf16.mxu0 0
          %1672 = vmatpush1.bf16.msra.mxu0 %v1652
          %1673 = vmatprep.subr.bf16.mxu0 0
          %1674 = vmatpush1.bf16.msra.mxu0 %v1653
          %1675 = vmatprep.subr.bf16.mxu0 0
          %1676 = vmatpush1.bf16.msra.mxu0 %v1654
          %1677 = vmatprep.subr.bf16.mxu0 0
          %1678 = vmatpush1.bf16.msra.mxu0 %v1655
          %1679 = vmatprep.subr.bf16.mxu0 0
          %1680 = vmatpush1.bf16.msra.mxu0 %v1656
          %1681 = vmatprep.subr.bf16.mxu0 0
          %1682 = vmatpush1.bf16.msra.mxu0 0
          %1683 = vmatprep.subr.bf16.mxu0 0
          %1684 = vmatpush1.bf16.msra.mxu0 0
          %1685 = vmatprep.subr.bf16.mxu0 0
          %1686 = vmatpush1.bf16.msra.mxu0 0
          %1687 = vmatprep.subr.bf16.mxu0 0
          %1688 = vmatpush1.bf16.msra.mxu0 0
          %1689 = vmatprep.subr.bf16.mxu0 0
          %1690 = vmatpush1.bf16.msra.mxu0 0
          %1691 = vmatprep.subr.bf16.mxu0 0
          %1692 = vmatpush1.bf16.msra.mxu0 0
          %1693 = vmatprep.subr.bf16.mxu0 0
          %1694 = vmatpush1.bf16.msra.mxu0 0
          %1695 = vmatprep.subr.bf16.mxu0 0
          %1696 = vmatpush1.bf16.msra.mxu0 0
          %1697 = vmatprep.mubr.bf16.mxu0 0
          %1698 = vmatmul.mubr.bf16.gmra.mrb[0].mxu0 %v1593
          %v1699 = vpop.f32.mrb[0].mxu0
          %v1700 = vadd.f32 %v1615, %v1699
          %v1701 = vpop.f32.mrb[0].mxu0
          %v1702 = vpop.f32.mrb[0].mxu0
          %v1703 = vpop.f32.mrb[0].mxu0
          %1704 = vdwg.mxu0
          %1705 = vst [vmem:[%s9] sm:$0xff] %v1700
        $region96: #{gcn_forward.1} parent=79 // pred_fallthru
          _
      $region80: #{gcn_forward.1} parent=55 // pred_fallthru
        _
      // Predicated region
      $region97: #{gcn_forward.1} parent=55 // pred_check
        %p1706 = pneg %p282
      $region98: #{gcn_forward.1} parent=55 // pred_check_branch
        %1708 = sbr.rel (%p1706) target = $region100
      $region99: #{gcn_forward.1} parent=55 // pred_region
        _
      $region100: #{gcn_forward.1} parent=55 // pred_fallthru
        _
      // Predicated region
      $region101: #{gcn_forward.1} parent=55 // pred_check
        %p1709 = pneg %p282
      $region102: #{gcn_forward.1} parent=55 // pred_check_branch
        %1711 = sbr.rel (%p1709) target = $region104
      $region103: #{gcn_forward.1} parent=55 // pred_region
        _
      $region104: #{gcn_forward.1} parent=55 // pred_fallthru
        _
    $region56: #{gcn_forward.1} parent=5 // pred_fallthru
      _
    %p1712 = scmp.le.s32.totalorder 2, %s15
    // Predicated region
    $region105: #{gcn_forward.1} parent=5 // pred_check
      %p1713 = pneg %p1712
    $region106: #{gcn_forward.1} parent=5 // pred_check_branch
      %1715 = sbr.rel (%p1713) target = $region108
    $region107: #{gcn_forward.1} parent=5 // pred_region
      %s1716 = ssub.s32 %s15, 2
    $region108: #{gcn_forward.1} parent=5 // pred_fallthru
      _
  $region6: #{gcn_forward.1} parent=0 // loop_footer
    %s19 = sadd.s32 1, %s15
  $region7: #{gcn_forward.1} parent=0 // loop_footer_branch
    %14 = sbr.rel target = $region3
  $region8: #{gcn_forward.1} parent=0 // loop_exit
    _

</llo_original>
